<compile_context>
chip_gen: v7x
topology: tpu7x:2x2x1
jax: 0.10.0
libtpu: 0.0.40
codegen_flags: <defaults>
</compile_context>

<pallas_src>
import functools

import jax
import jax.numpy as jnp
from jax import lax
from jax.experimental import pallas as pl
from jax.experimental.pallas import tpu as pltpu


def _round_up(n, m):
    return ((n + m - 1) // m) * m


def _device_kind():
    try:
        return jax.devices()[0].device_kind.lower()
    except Exception:  # no device info available (e.g. AOT) -> conservative defaults
        return ""


def _is_two_tensorcore(kind):
    # v7x has 2 TensorCores per chip; v5e/v6e have 1.
    return ("v7" in kind) or ("7x" in kind)


def _vmem_budgets(kind):
    """(per-kernel block budget, vmem_limit cap) in bytes, generation-aware."""
    if _is_two_tensorcore(kind):          # v7x: 64 MiB physical VMEM per TC
        return 24 << 20, 48 << 20
    return 48 << 20, 96 << 20             # v5e / v6e: 128 MiB physical VMEM


def _default_batch_shards(B, kind):
    # Splitting the batch on a single-TC chip runs two full serial timestep chains
    # back-to-back (~2x slower); only shard on v7x and only with >= 8 rows per shard.
    if _is_two_tensorcore(kind) and B % 2 == 0 and (B // 2) % 8 == 0:
        return 2
    return 1


def _pick_time_block(T, Bs, Hp, gx_bytes, out_bytes, budget_bytes, fixed_bytes):
    """Largest time block whose (double-buffered) gx + out blocks fit the VMEM budget."""
    per_step = 2 * Bs * 4 * Hp * gx_bytes + 2 * Bs * Hp * out_bytes
    t_max = max(1, int((budget_bytes - fixed_bytes) // per_step))
    if T <= t_max:
        return T
    if t_max >= 8:
        return min((t_max // 8) * 8, T)   # keep split blocks a multiple of 8 steps
    return t_max


def _lstm_recurrent_kernel(gx_ref, whh_ref, out_ref, h_ref, c_ref):
    """Recurrent part of the LSTM. One grid step == one block of t_blk timesteps.

    gx_ref  : (t_blk, Bs, 4*Hp)  precomputed x @ W_ih^T + bias (time-major, gate-padded)
    whh_ref : (Hp, 4*Hp)         hidden->gates weight, untiled VMEM-resident operand
    out_ref : (t_blk, Bs, Hp)    hidden-state outputs for this block (time-major)
    h_ref   : (Bs, Hp)           VMEM scratch, hidden-state carry across time blocks
    c_ref   : (Bs, Hp)           VMEM scratch, cell-state carry
    """
    t_blk_idx = pl.program_id(1)

    @pl.when(t_blk_idx == 0)
    def _init():
        h_ref[...] = jnp.zeros(h_ref.shape, h_ref.dtype)
        c_ref[...] = jnp.zeros(c_ref.shape, c_ref.dtype)

    hp = h_ref.shape[-1]
    t_blk = gx_ref.shape[0]
    w_dtype = whh_ref.dtype

    def step(i, carry):
        h, c = carry
        # Re-load W_hh from VMEM each step (cheap vld, weight is VMEM-resident) instead
        # of holding it live in vregs across the whole block -> no spills on the chain.
        whh = whh_ref[...]
        acc = jnp.dot(h.astype(w_dtype), whh, preferred_element_type=jnp.float32)
        gates = gx_ref[i].astype(jnp.float32) + acc          # (Bs, 4*Hp)
        # PyTorch gate order (i, f, g, o); sigmoid(x) = 0.5*tanh(0.5*x) + 0.5 -> 1 EUP op.
        i_g = 0.5 * jnp.tanh(0.5 * gates[:, 0 * hp:1 * hp]) + 0.5
        f_g = 0.5 * jnp.tanh(0.5 * gates[:, 1 * hp:2 * hp]) + 0.5
        g_g = jnp.tanh(gates[:, 2 * hp:3 * hp])
        o_g = 0.5 * jnp.tanh(0.5 * gates[:, 3 * hp:4 * hp]) + 0.5
        c = f_g * c + i_g * g_g
        h = o_g * jnp.tanh(c)
        out_ref[i] = h.astype(out_ref.dtype)                 # full-tile, lane-dense store
        return (h, c)

    unroll = t_blk if t_blk <= 8 else 8
    h, c = lax.fori_loop(0, t_blk, step, (h_ref[...], c_ref[...]), unroll=unroll)
    h_ref[...] = h
    c_ref[...] = c


@functools.partial(jax.jit,
                   static_argnames=("hidden_size", "weight_dtype", "gate_dtype",
                                    "batch_shards"))
def lstm_module_forward(x, w_ih, w_hh, b_ih, b_hh, *, hidden_size,
                        weight_dtype=jnp.bfloat16, gate_dtype=jnp.bfloat16,
                        batch_shards=None):
    """Forward pass of LSTMModule (single-layer LSTM + eval-mode dropout).

    x     : (B, T, I)  float32, batch_first=True
    w_ih  : (4H, I)    PyTorch weight_ih_l0
    w_hh  : (4H, H)    PyTorch weight_hh_l0
    b_ih  : (4H,)      PyTorch bias_ih_l0
    b_hh  : (4H,)      PyTorch bias_hh_l0
    returns lstm_out : (B, T, H)
    """
    B, T, I = x.shape
    H = hidden_size
    Hp = _round_up(H, 128)  # 128-lane-aligned per-gate width
    f32 = jnp.float32
    kind = _device_kind()

    # ---- Pad the (small) weights so each gate occupies a 128-aligned lane slab. ------
    # Zero padding => padded gate pre-activations are 0 => padded h/c lanes stay 0.
    w_ih_p = jnp.zeros((4, Hp, I), f32).at[:, :H, :].set(
        w_ih.astype(f32).reshape(4, H, I)).reshape(4 * Hp, I)
    bias_p = jnp.zeros((4, Hp), f32).at[:, :H].set(
        (b_ih + b_hh).astype(f32).reshape(4, H)).reshape(4 * Hp)
    w_hh_p = jnp.zeros((4, Hp, Hp), f32).at[:, :H, :H].set(
        w_hh.astype(f32).reshape(4, H, H))
    # layout (k, gate*Hp + o) == W_hh[gate*H + o, k]  so the kernel does h @ W
    whh_k = jnp.transpose(w_hh_p, (2, 0, 1)).reshape(Hp, 4 * Hp).astype(weight_dtype)

    # ---- Hoisted, TIME-MAJOR input projection: one big XLA matmul, bf16 stream. ------
    gx = (jnp.einsum("bti,gi->tbg", x.astype(f32), w_ih_p,
                     preferred_element_type=f32,
                     precision=lax.Precision.HIGHEST) + bias_p
          ).astype(gate_dtype)                                   # (T, B, 4*Hp)

    # ---- Grid / block sizing (generation-aware). --------------------------------------
    if batch_shards is None:
        batch_shards = _default_batch_shards(B, kind)
    assert B % batch_shards == 0
    Bs = B // batch_shards
    # (8,128) rule on the last-two block dims: batch block must be full B or 8-aligned.
    assert Bs == B or Bs % 8 == 0, (B, batch_shards)

    gx_bytes = jnp.dtype(gate_dtype).itemsize
    out_bytes = jnp.dtype(x.dtype).itemsize
    w_bytes = jnp.dtype(weight_dtype).itemsize
    fixed_bytes = Hp * 4 * Hp * w_bytes + 2 * Bs * Hp * 4       # resident W_hh + h/c scratch
    block_budget, vmem_cap = _vmem_budgets(kind)
    t_blk = _pick_time_block(T, Bs, Hp, gx_bytes, out_bytes, block_budget, fixed_bytes)

    # Pad T up to a multiple of t_blk (never fall back to staging the whole sequence).
    # Trailing dummy steps see zero pre-activations; the recurrence is causal so the
    # first T outputs are unaffected and the padding is sliced off below.
    n_t = -(-T // t_blk)
    T_pad = n_t * t_blk
    if T_pad != T:
        gx = jnp.pad(gx, ((0, T_pad - T), (0, 0), (0, 0)))

    needed = (fixed_bytes
              + 2 * Bs * t_blk * 4 * Hp * gx_bytes
              + 2 * Bs * t_blk * Hp * out_bytes)
    vmem_limit = int(min(vmem_cap, max(32 << 20, needed + (8 << 20))))

    # ---- Recurrent Pallas kernel: time-major blocks, batch-sharded grid. --------------
    out_p = pl.pallas_call(
        _lstm_recurrent_kernel,
        out_shape=jax.ShapeDtypeStruct((T_pad, B, Hp), x.dtype),
        grid_spec=pltpu.PrefetchScalarGridSpec(
            num_scalar_prefetch=0,
            grid=(batch_shards, n_t),
            in_specs=[
                pl.BlockSpec((t_blk, Bs, 4 * Hp), lambda b, t: (t, b, 0)),   # gates_x
                # Constant W_hh: single VMEM-resident copy, no double-buffering.
                pl.BlockSpec(memory_space=pltpu.MemorySpace.VMEM),
            ],
            out_specs=pl.BlockSpec((t_blk, Bs, Hp), lambda b, t: (t, b, 0)),
            scratch_shapes=[
                pltpu.VMEM((Bs, Hp), jnp.float32),   # hidden-state carry
                pltpu.VMEM((Bs, Hp), jnp.float32),   # cell-state carry
            ],
        ),
        compiler_params=pltpu.CompilerParams(
            # batch shards are independent (both v7x TensorCores); time blocks carry
            # h/c state and must run sequentially.
            dimension_semantics=("parallel", "arbitrary"),
            vmem_limit_bytes=vmem_limit,
        ),
    )(gx, whh_k)

    # Un-pad (skipped entirely when H % 128 == 0 and T needed no padding) and go back
    # to batch-major once.
    if Hp != H or T_pad != T:
        out_p = out_p[:T, :, :H]
    lstm_out = jnp.transpose(out_p, (1, 0, 2))
    # Dropout(0.3) in eval mode == identity.
    return lstm_out


def _lstm_reference(x, w_ih, w_hh, b_ih, b_hh):
    """Pure-JAX reference matching nn.LSTM (batch_first=True, zero initial state)."""
    B, T, _ = x.shape
    H = w_hh.shape[1]

    def step(carry, x_t):
        h, c = carry
        gates = (jnp.dot(x_t, w_ih.T, precision=lax.Precision.HIGHEST)
                 + jnp.dot(h, w_hh.T, precision=lax.Precision.HIGHEST)
                 + b_ih + b_hh)
        i_g = jax.nn.sigmoid(gates[:, 0 * H:1 * H])
        f_g = jax.nn.sigmoid(gates[:, 1 * H:2 * H])
        g_g = jnp.tanh(gates[:, 2 * H:3 * H])
        o_g = jax.nn.sigmoid(gates[:, 3 * H:4 * H])
        c = f_g * c + i_g * g_g
        h = o_g * jnp.tanh(c)
        return (h, c), h

    init = (jnp.zeros((B, H), jnp.float32), jnp.zeros((B, H), jnp.float32))
    _, ys = lax.scan(step, init, jnp.transpose(x, (1, 0, 2)))
    return jnp.transpose(ys, (1, 0, 2))


def _init_params(key, input_size, hidden_size):
    """Deterministic nn.LSTM-style init: U(-1/sqrt(H), 1/sqrt(H))."""
    k1, k2, k3, k4 = jax.random.split(key, 4)
    bound = 1.0 / jnp.sqrt(jnp.float32(hidden_size))
    w_ih = jax.random.uniform(k1, (4 * hidden_size, input_size), jnp.float32, -bound, bound)
    w_hh = jax.random.uniform(k2, (4 * hidden_size, hidden_size), jnp.float32, -bound, bound)
    b_ih = jax.random.uniform(k3, (4 * hidden_size,), jnp.float32, -bound, bound)
    b_hh = jax.random.uniform(k4, (4 * hidden_size,), jnp.float32, -bound, bound)
    return w_ih, w_hh, b_ih, b_hh


if __name__ == "__main__":
    B, T, I, H = 2, 8, 16, 32

    key = jax.random.PRNGKey(0)
    kx, kp = jax.random.split(key)
    x = jax.random.normal(kx, (B, T, I), dtype=jnp.float32)
    w_ih, w_hh, b_ih, b_hh = _init_params(kp, I, H)

    out = lstm_module_forward(x, w_ih, w_hh, b_ih, b_hh, hidden_size=H)
    out = jax.block_until_ready(out)

    assert out.shape == (B, T, H), out.shape
    assert bool(jnp.all(jnp.isfinite(out)))

    ref = _lstm_reference(x, w_ih, w_hh, b_ih, b_hh)
    max_err = float(jnp.max(jnp.abs(out - ref)))
    # bf16 W_hh / gx defaults (f32 accumulate): 2e-2 tolerance for the saturating gates.
    assert jnp.allclose(out, ref, rtol=2e-2, atol=2e-2), max_err

    print("KERNEL_OK")
</pallas_src>

<mosaic_0001>
module attributes {stable_mosaic.version = 11 : i64} {
  func.func @_lstm_recurrent_kernel(%arg0: i32, %arg1: i32, %arg2: memref<8x2x512xbf16, #tpu.memory_space<vmem>>, %arg3: memref<128x512xbf16, #tpu.memory_space<vmem>>, %arg4: memref<8x2x128xf32, #tpu.memory_space<vmem>>, %arg5: memref<2x128xf32, #tpu.memory_space<vmem>>, %arg6: memref<2x128xf32, #tpu.memory_space<vmem>>) attributes {dimension_semantics = [#tpu.dimension_semantics<parallel>, #tpu.dimension_semantics<arbitrary>], iteration_bounds = array<i64: 1, 1>, scalar_prefetch = 0 : i64, scratch_operands = 2 : i64, tpu.core_type = #tpu.core_type<tc>, window_params = [{transform_indices = @transform_0, window_bounds = array<i64: 8, 2, 512>}, {pipeline_mode = #tpu.pipeline_mode<synchronous>, transform_indices = @transform_1, window_bounds = array<i64: 128, 512>}, {transform_indices = @transform_2, window_bounds = array<i64: 8, 2, 128>}]} {
    %c0_i32 = arith.constant 0 : i32
    %0 = arith.cmpi eq, %arg1, %c0_i32 : i32
    %1 = arith.extui %0 : i1 to i32
    %c0_i32_0 = arith.constant 0 : i32
    %2 = arith.cmpi ne, %1, %c0_i32_0 : i32
    scf.if %2 {
      %cst_136 = arith.constant 0.000000e+00 : f32
      %351 = vector.broadcast %cst_136 : f32 to vector<2x128xf32>
      %c0_137 = arith.constant 0 : index
      %c0_138 = arith.constant 0 : index
      %352 = vector.load %arg5[%c0_137, %c0_138] : memref<2x128xf32, #tpu.memory_space<vmem>>, vector<2x128xf32>
      tpu.vector_store %arg5[%c0_137, %c0_138], %351 {strides = array<i32>} : memref<2x128xf32, #tpu.memory_space<vmem>>, vector<2x128xf32>,
      %cst_139 = arith.constant 0.000000e+00 : f32
      %353 = vector.broadcast %cst_139 : f32 to vector<2x128xf32>
      %c0_140 = arith.constant 0 : index
      %c0_141 = arith.constant 0 : index
      %354 = vector.load %arg6[%c0_140, %c0_141] : memref<2x128xf32, #tpu.memory_space<vmem>>, vector<2x128xf32>
      tpu.vector_store %arg6[%c0_140, %c0_141], %353 {strides = array<i32>} : memref<2x128xf32, #tpu.memory_space<vmem>>, vector<2x128xf32>,
    } else {
    }
    %c0 = arith.constant 0 : index
    %c0_1 = arith.constant 0 : index
    %3 = vector.load %arg5[%c0, %c0_1] : memref<2x128xf32, #tpu.memory_space<vmem>>, vector<2x128xf32>
    %c0_2 = arith.constant 0 : index
    %c0_3 = arith.constant 0 : index
    %4 = vector.load %arg6[%c0_2, %c0_3] : memref<2x128xf32, #tpu.memory_space<vmem>>, vector<2x128xf32>
    %c0_i32_4 = arith.constant 0 : i32
    %c0_5 = arith.constant 0 : index
    %c0_6 = arith.constant 0 : index
    %5 = vector.load %arg3[%c0_5, %c0_6] : memref<128x512xbf16, #tpu.memory_space<vmem>>, vector<128x512xbf16>
    %6 = arith.truncf %3 : vector<2x128xf32> to vector<2x128xbf16>
    %cst = arith.constant dense<0.000000e+00> : vector<2x512xf32>
    %7 = tpu.matmul %6, %5, %cst {dimension_numbers = #tpu.dot_dimension_numbers<[1], [0], [0], [1], [0, 0, 1, 1], [], []>} : vector<2x128xbf16>, vector<128x512xbf16>, vector<2x512xf32> -> vector<2x512xf32>
    %8 = arith.index_cast %c0_i32_4 : i32 to index
    %c0_7 = arith.constant 0 : index
    %c0_8 = arith.constant 0 : index
    %9 = vector.load %arg2[%8, %c0_7, %c0_8] : memref<8x2x512xbf16, #tpu.memory_space<vmem>>, vector<1x2x512xbf16>
    %10 = vector.shape_cast %9 : vector<1x2x512xbf16> to vector<2x512xbf16>
    %11 = arith.extf %10 : vector<2x512xbf16> to vector<2x512xf32>
    %12 = arith.addf %11, %7 : vector<2x512xf32>
    %13 = vector.extract_strided_slice %12 {offsets = [0, 0], sizes = [2, 128], strides = [1, 1]} : vector<2x512xf32> to vector<2x128xf32>
    %cst_9 = arith.constant 5.000000e-01 : f32
    %14 = vector.broadcast %cst_9 : f32 to vector<2x128xf32>
    %15 = arith.mulf %14, %13 : vector<2x128xf32>
    %16 = math.tanh %15 : vector<2x128xf32>
    %cst_10 = arith.constant 5.000000e-01 : f32
    %17 = vector.broadcast %cst_10 : f32 to vector<2x128xf32>
    %18 = arith.mulf %17, %16 : vector<2x128xf32>
    %cst_11 = arith.constant 5.000000e-01 : f32
    %19 = vector.broadcast %cst_11 : f32 to vector<2x128xf32>
    %20 = arith.addf %18, %19 : vector<2x128xf32>
    %21 = vector.extract_strided_slice %12 {offsets = [0, 128], sizes = [2, 128], strides = [1, 1]} : vector<2x512xf32> to vector<2x128xf32>
    %cst_12 = arith.constant 5.000000e-01 : f32
    %22 = vector.broadcast %cst_12 : f32 to vector<2x128xf32>
    %23 = arith.mulf %22, %21 : vector<2x128xf32>
    %24 = math.tanh %23 : vector<2x128xf32>
    %cst_13 = arith.constant 5.000000e-01 : f32
    %25 = vector.broadcast %cst_13 : f32 to vector<2x128xf32>
    %26 = arith.mulf %25, %24 : vector<2x128xf32>
    %cst_14 = arith.constant 5.000000e-01 : f32
    %27 = vector.broadcast %cst_14 : f32 to vector<2x128xf32>
    %28 = arith.addf %26, %27 : vector<2x128xf32>
    %29 = vector.extract_strided_slice %12 {offsets = [0, 256], sizes = [2, 128], strides = [1, 1]} : vector<2x512xf32> to vector<2x128xf32>
    %30 = math.tanh %29 : vector<2x128xf32>
    %31 = vector.extract_strided_slice %12 {offsets = [0, 384], sizes = [2, 128], strides = [1, 1]} : vector<2x512xf32> to vector<2x128xf32>
    %cst_15 = arith.constant 5.000000e-01 : f32
    %32 = vector.broadcast %cst_15 : f32 to vector<2x128xf32>
    %33 = arith.mulf %32, %31 : vector<2x128xf32>
    %34 = math.tanh %33 : vector<2x128xf32>
    %cst_16 = arith.constant 5.000000e-01 : f32
    %35 = vector.broadcast %cst_16 : f32 to vector<2x128xf32>
    %36 = arith.mulf %35, %34 : vector<2x128xf32>
    %cst_17 = arith.constant 5.000000e-01 : f32
    %37 = vector.broadcast %cst_17 : f32 to vector<2x128xf32>
    %38 = arith.addf %36, %37 : vector<2x128xf32>
    %39 = arith.mulf %28, %4 : vector<2x128xf32>
    %40 = arith.mulf %20, %30 : vector<2x128xf32>
    %41 = arith.addf %39, %40 : vector<2x128xf32>
    %42 = math.tanh %41 : vector<2x128xf32>
    %43 = arith.mulf %38, %42 : vector<2x128xf32>
    %44 = arith.index_cast %c0_i32_4 : i32 to index
    %c0_18 = arith.constant 0 : index
    %c0_19 = arith.constant 0 : index
    %45 = vector.load %arg4[%44, %c0_18, %c0_19] : memref<8x2x128xf32, #tpu.memory_space<vmem>>, vector<1x2x128xf32>
    %46 = vector.shape_cast %45 : vector<1x2x128xf32> to vector<2x128xf32>
    %47 = vector.shape_cast %43 : vector<2x128xf32> to vector<1x2x128xf32>
    tpu.vector_store %arg4[%44, %c0_18, %c0_19], %47 {strides = array<i32>} : memref<8x2x128xf32, #tpu.memory_space<vmem>>, vector<1x2x128xf32>,
    %c1_i32 = arith.constant 1 : i32
    %c0_20 = arith.constant 0 : index
    %c0_21 = arith.constant 0 : index
    %48 = vector.load %arg3[%c0_20, %c0_21] : memref<128x512xbf16, #tpu.memory_space<vmem>>, vector<128x512xbf16>
    %49 = arith.truncf %43 : vector<2x128xf32> to vector<2x128xbf16>
    %cst_22 = arith.constant dense<0.000000e+00> : vector<2x512xf32>
    %50 = tpu.matmul %49, %48, %cst_22 {dimension_numbers = #tpu.dot_dimension_numbers<[1], [0], [0], [1], [0, 0, 1, 1], [], []>} : vector<2x128xbf16>, vector<128x512xbf16>, vector<2x512xf32> -> vector<2x512xf32>
    %51 = arith.index_cast %c1_i32 : i32 to index
    %c0_23 = arith.constant 0 : index
    %c0_24 = arith.constant 0 : index
    %52 = vector.load %arg2[%51, %c0_23, %c0_24] : memref<8x2x512xbf16, #tpu.memory_space<vmem>>, vector<1x2x512xbf16>
    %53 = vector.shape_cast %52 : vector<1x2x512xbf16> to vector<2x512xbf16>
    %54 = arith.extf %53 : vector<2x512xbf16> to vector<2x512xf32>
    %55 = arith.addf %54, %50 : vector<2x512xf32>
    %56 = vector.extract_strided_slice %55 {offsets = [0, 0], sizes = [2, 128], strides = [1, 1]} : vector<2x512xf32> to vector<2x128xf32>
    %cst_25 = arith.constant 5.000000e-01 : f32
    %57 = vector.broadcast %cst_25 : f32 to vector<2x128xf32>
    %58 = arith.mulf %57, %56 : vector<2x128xf32>
    %59 = math.tanh %58 : vector<2x128xf32>
    %cst_26 = arith.constant 5.000000e-01 : f32
    %60 = vector.broadcast %cst_26 : f32 to vector<2x128xf32>
    %61 = arith.mulf %60, %59 : vector<2x128xf32>
    %cst_27 = arith.constant 5.000000e-01 : f32
    %62 = vector.broadcast %cst_27 : f32 to vector<2x128xf32>
    %63 = arith.addf %61, %62 : vector<2x128xf32>
    %64 = vector.extract_strided_slice %55 {offsets = [0, 128], sizes = [2, 128], strides = [1, 1]} : vector<2x512xf32> to vector<2x128xf32>
    %cst_28 = arith.constant 5.000000e-01 : f32
    %65 = vector.broadcast %cst_28 : f32 to vector<2x128xf32>
    %66 = arith.mulf %65, %64 : vector<2x128xf32>
    %67 = math.tanh %66 : vector<2x128xf32>
    %cst_29 = arith.constant 5.000000e-01 : f32
    %68 = vector.broadcast %cst_29 : f32 to vector<2x128xf32>
    %69 = arith.mulf %68, %67 : vector<2x128xf32>
    %cst_30 = arith.constant 5.000000e-01 : f32
    %70 = vector.broadcast %cst_30 : f32 to vector<2x128xf32>
    %71 = arith.addf %69, %70 : vector<2x128xf32>
    %72 = vector.extract_strided_slice %55 {offsets = [0, 256], sizes = [2, 128], strides = [1, 1]} : vector<2x512xf32> to vector<2x128xf32>
    %73 = math.tanh %72 : vector<2x128xf32>
    %74 = vector.extract_strided_slice %55 {offsets = [0, 384], sizes = [2, 128], strides = [1, 1]} : vector<2x512xf32> to vector<2x128xf32>
    %cst_31 = arith.constant 5.000000e-01 : f32
    %75 = vector.broadcast %cst_31 : f32 to vector<2x128xf32>
    %76 = arith.mulf %75, %74 : vector<2x128xf32>
    %77 = math.tanh %76 : vector<2x128xf32>
    %cst_32 = arith.constant 5.000000e-01 : f32
    %78 = vector.broadcast %cst_32 : f32 to vector<2x128xf32>
    %79 = arith.mulf %78, %77 : vector<2x128xf32>
    %cst_33 = arith.constant 5.000000e-01 : f32
    %80 = vector.broadcast %cst_33 : f32 to vector<2x128xf32>
    %81 = arith.addf %79, %80 : vector<2x128xf32>
    %82 = arith.mulf %71, %41 : vector<2x128xf32>
    %83 = arith.mulf %63, %73 : vector<2x128xf32>
    %84 = arith.addf %82, %83 : vector<2x128xf32>
    %85 = math.tanh %84 : vector<2x128xf32>
    %86 = arith.mulf %81, %85 : vector<2x128xf32>
    %87 = arith.index_cast %c1_i32 : i32 to index
    %c0_34 = arith.constant 0 : index
    %c0_35 = arith.constant 0 : index
    %88 = vector.load %arg4[%87, %c0_34, %c0_35] : memref<8x2x128xf32, #tpu.memory_space<vmem>>, vector<1x2x128xf32>
    %89 = vector.shape_cast %88 : vector<1x2x128xf32> to vector<2x128xf32>
    %90 = vector.shape_cast %86 : vector<2x128xf32> to vector<1x2x128xf32>
    tpu.vector_store %arg4[%87, %c0_34, %c0_35], %90 {strides = array<i32>} : memref<8x2x128xf32, #tpu.memory_space<vmem>>, vector<1x2x128xf32>,
    %c2_i32 = arith.constant 2 : i32
    %c0_36 = arith.constant 0 : index
    %c0_37 = arith.constant 0 : index
    %91 = vector.load %arg3[%c0_36, %c0_37] : memref<128x512xbf16, #tpu.memory_space<vmem>>, vector<128x512xbf16>
    %92 = arith.truncf %86 : vector<2x128xf32> to vector<2x128xbf16>
    %cst_38 = arith.constant dense<0.000000e+00> : vector<2x512xf32>
    %93 = tpu.matmul %92, %91, %cst_38 {dimension_numbers = #tpu.dot_dimension_numbers<[1], [0], [0], [1], [0, 0, 1, 1], [], []>} : vector<2x128xbf16>, vector<128x512xbf16>, vector<2x512xf32> -> vector<2x512xf32>
    %94 = arith.index_cast %c2_i32 : i32 to index
    %c0_39 = arith.constant 0 : index
    %c0_40 = arith.constant 0 : index
    %95 = vector.load %arg2[%94, %c0_39, %c0_40] : memref<8x2x512xbf16, #tpu.memory_space<vmem>>, vector<1x2x512xbf16>
    %96 = vector.shape_cast %95 : vector<1x2x512xbf16> to vector<2x512xbf16>
    %97 = arith.extf %96 : vector<2x512xbf16> to vector<2x512xf32>
    %98 = arith.addf %97, %93 : vector<2x512xf32>
    %99 = vector.extract_strided_slice %98 {offsets = [0, 0], sizes = [2, 128], strides = [1, 1]} : vector<2x512xf32> to vector<2x128xf32>
    %cst_41 = arith.constant 5.000000e-01 : f32
    %100 = vector.broadcast %cst_41 : f32 to vector<2x128xf32>
    %101 = arith.mulf %100, %99 : vector<2x128xf32>
    %102 = math.tanh %101 : vector<2x128xf32>
    %cst_42 = arith.constant 5.000000e-01 : f32
    %103 = vector.broadcast %cst_42 : f32 to vector<2x128xf32>
    %104 = arith.mulf %103, %102 : vector<2x128xf32>
    %cst_43 = arith.constant 5.000000e-01 : f32
    %105 = vector.broadcast %cst_43 : f32 to vector<2x128xf32>
    %106 = arith.addf %104, %105 : vector<2x128xf32>
    %107 = vector.extract_strided_slice %98 {offsets = [0, 128], sizes = [2, 128], strides = [1, 1]} : vector<2x512xf32> to vector<2x128xf32>
    %cst_44 = arith.constant 5.000000e-01 : f32
    %108 = vector.broadcast %cst_44 : f32 to vector<2x128xf32>
    %109 = arith.mulf %108, %107 : vector<2x128xf32>
    %110 = math.tanh %109 : vector<2x128xf32>
    %cst_45 = arith.constant 5.000000e-01 : f32
    %111 = vector.broadcast %cst_45 : f32 to vector<2x128xf32>
    %112 = arith.mulf %111, %110 : vector<2x128xf32>
    %cst_46 = arith.constant 5.000000e-01 : f32
    %113 = vector.broadcast %cst_46 : f32 to vector<2x128xf32>
    %114 = arith.addf %112, %113 : vector<2x128xf32>
    %115 = vector.extract_strided_slice %98 {offsets = [0, 256], sizes = [2, 128], strides = [1, 1]} : vector<2x512xf32> to vector<2x128xf32>
    %116 = math.tanh %115 : vector<2x128xf32>
    %117 = vector.extract_strided_slice %98 {offsets = [0, 384], sizes = [2, 128], strides = [1, 1]} : vector<2x512xf32> to vector<2x128xf32>
    %cst_47 = arith.constant 5.000000e-01 : f32
    %118 = vector.broadcast %cst_47 : f32 to vector<2x128xf32>
    %119 = arith.mulf %118, %117 : vector<2x128xf32>
    %120 = math.tanh %119 : vector<2x128xf32>
    %cst_48 = arith.constant 5.000000e-01 : f32
    %121 = vector.broadcast %cst_48 : f32 to vector<2x128xf32>
    %122 = arith.mulf %121, %120 : vector<2x128xf32>
    %cst_49 = arith.constant 5.000000e-01 : f32
    %123 = vector.broadcast %cst_49 : f32 to vector<2x128xf32>
    %124 = arith.addf %122, %123 : vector<2x128xf32>
    %125 = arith.mulf %114, %84 : vector<2x128xf32>
    %126 = arith.mulf %106, %116 : vector<2x128xf32>
    %127 = arith.addf %125, %126 : vector<2x128xf32>
    %128 = math.tanh %127 : vector<2x128xf32>
    %129 = arith.mulf %124, %128 : vector<2x128xf32>
    %130 = arith.index_cast %c2_i32 : i32 to index
    %c0_50 = arith.constant 0 : index
    %c0_51 = arith.constant 0 : index
    %131 = vector.load %arg4[%130, %c0_50, %c0_51] : memref<8x2x128xf32, #tpu.memory_space<vmem>>, vector<1x2x128xf32>
    %132 = vector.shape_cast %131 : vector<1x2x128xf32> to vector<2x128xf32>
    %133 = vector.shape_cast %129 : vector<2x128xf32> to vector<1x2x128xf32>
    tpu.vector_store %arg4[%130, %c0_50, %c0_51], %133 {strides = array<i32>} : memref<8x2x128xf32, #tpu.memory_space<vmem>>, vector<1x2x128xf32>,
    %c3_i32 = arith.constant 3 : i32
    %c0_52 = arith.constant 0 : index
    %c0_53 = arith.constant 0 : index
    %134 = vector.load %arg3[%c0_52, %c0_53] : memref<128x512xbf16, #tpu.memory_space<vmem>>, vector<128x512xbf16>
    %135 = arith.truncf %129 : vector<2x128xf32> to vector<2x128xbf16>
    %cst_54 = arith.constant dense<0.000000e+00> : vector<2x512xf32>
    %136 = tpu.matmul %135, %134, %cst_54 {dimension_numbers = #tpu.dot_dimension_numbers<[1], [0], [0], [1], [0, 0, 1, 1], [], []>} : vector<2x128xbf16>, vector<128x512xbf16>, vector<2x512xf32> -> vector<2x512xf32>
    %137 = arith.index_cast %c3_i32 : i32 to index
    %c0_55 = arith.constant 0 : index
    %c0_56 = arith.constant 0 : index
    %138 = vector.load %arg2[%137, %c0_55, %c0_56] : memref<8x2x512xbf16, #tpu.memory_space<vmem>>, vector<1x2x512xbf16>
    %139 = vector.shape_cast %138 : vector<1x2x512xbf16> to vector<2x512xbf16>
    %140 = arith.extf %139 : vector<2x512xbf16> to vector<2x512xf32>
    %141 = arith.addf %140, %136 : vector<2x512xf32>
    %142 = vector.extract_strided_slice %141 {offsets = [0, 0], sizes = [2, 128], strides = [1, 1]} : vector<2x512xf32> to vector<2x128xf32>
    %cst_57 = arith.constant 5.000000e-01 : f32
    %143 = vector.broadcast %cst_57 : f32 to vector<2x128xf32>
    %144 = arith.mulf %143, %142 : vector<2x128xf32>
    %145 = math.tanh %144 : vector<2x128xf32>
    %cst_58 = arith.constant 5.000000e-01 : f32
    %146 = vector.broadcast %cst_58 : f32 to vector<2x128xf32>
    %147 = arith.mulf %146, %145 : vector<2x128xf32>
    %cst_59 = arith.constant 5.000000e-01 : f32
    %148 = vector.broadcast %cst_59 : f32 to vector<2x128xf32>
    %149 = arith.addf %147, %148 : vector<2x128xf32>
    %150 = vector.extract_strided_slice %141 {offsets = [0, 128], sizes = [2, 128], strides = [1, 1]} : vector<2x512xf32> to vector<2x128xf32>
    %cst_60 = arith.constant 5.000000e-01 : f32
    %151 = vector.broadcast %cst_60 : f32 to vector<2x128xf32>
    %152 = arith.mulf %151, %150 : vector<2x128xf32>
    %153 = math.tanh %152 : vector<2x128xf32>
    %cst_61 = arith.constant 5.000000e-01 : f32
    %154 = vector.broadcast %cst_61 : f32 to vector<2x128xf32>
    %155 = arith.mulf %154, %153 : vector<2x128xf32>
    %cst_62 = arith.constant 5.000000e-01 : f32
    %156 = vector.broadcast %cst_62 : f32 to vector<2x128xf32>
    %157 = arith.addf %155, %156 : vector<2x128xf32>
    %158 = vector.extract_strided_slice %141 {offsets = [0, 256], sizes = [2, 128], strides = [1, 1]} : vector<2x512xf32> to vector<2x128xf32>
    %159 = math.tanh %158 : vector<2x128xf32>
    %160 = vector.extract_strided_slice %141 {offsets = [0, 384], sizes = [2, 128], strides = [1, 1]} : vector<2x512xf32> to vector<2x128xf32>
    %cst_63 = arith.constant 5.000000e-01 : f32
    %161 = vector.broadcast %cst_63 : f32 to vector<2x128xf32>
    %162 = arith.mulf %161, %160 : vector<2x128xf32>
    %163 = math.tanh %162 : vector<2x128xf32>
    %cst_64 = arith.constant 5.000000e-01 : f32
    %164 = vector.broadcast %cst_64 : f32 to vector<2x128xf32>
    %165 = arith.mulf %164, %163 : vector<2x128xf32>
    %cst_65 = arith.constant 5.000000e-01 : f32
    %166 = vector.broadcast %cst_65 : f32 to vector<2x128xf32>
    %167 = arith.addf %165, %166 : vector<2x128xf32>
    %168 = arith.mulf %157, %127 : vector<2x128xf32>
    %169 = arith.mulf %149, %159 : vector<2x128xf32>
    %170 = arith.addf %168, %169 : vector<2x128xf32>
    %171 = math.tanh %170 : vector<2x128xf32>
    %172 = arith.mulf %167, %171 : vector<2x128xf32>
    %173 = arith.index_cast %c3_i32 : i32 to index
    %c0_66 = arith.constant 0 : index
    %c0_67 = arith.constant 0 : index
    %174 = vector.load %arg4[%173, %c0_66, %c0_67] : memref<8x2x128xf32, #tpu.memory_space<vmem>>, vector<1x2x128xf32>
    %175 = vector.shape_cast %174 : vector<1x2x128xf32> to vector<2x128xf32>
    %176 = vector.shape_cast %172 : vector<2x128xf32> to vector<1x2x128xf32>
    tpu.vector_store %arg4[%173, %c0_66, %c0_67], %176 {strides = array<i32>} : memref<8x2x128xf32, #tpu.memory_space<vmem>>, vector<1x2x128xf32>,
    %c4_i32 = arith.constant 4 : i32
    %c0_68 = arith.constant 0 : index
    %c0_69 = arith.constant 0 : index
    %177 = vector.load %arg3[%c0_68, %c0_69] : memref<128x512xbf16, #tpu.memory_space<vmem>>, vector<128x512xbf16>
    %178 = arith.truncf %172 : vector<2x128xf32> to vector<2x128xbf16>
    %cst_70 = arith.constant dense<0.000000e+00> : vector<2x512xf32>
    %179 = tpu.matmul %178, %177, %cst_70 {dimension_numbers = #tpu.dot_dimension_numbers<[1], [0], [0], [1], [0, 0, 1, 1], [], []>} : vector<2x128xbf16>, vector<128x512xbf16>, vector<2x512xf32> -> vector<2x512xf32>
    %180 = arith.index_cast %c4_i32 : i32 to index
    %c0_71 = arith.constant 0 : index
    %c0_72 = arith.constant 0 : index
    %181 = vector.load %arg2[%180, %c0_71, %c0_72] : memref<8x2x512xbf16, #tpu.memory_space<vmem>>, vector<1x2x512xbf16>
    %182 = vector.shape_cast %181 : vector<1x2x512xbf16> to vector<2x512xbf16>
    %183 = arith.extf %182 : vector<2x512xbf16> to vector<2x512xf32>
    %184 = arith.addf %183, %179 : vector<2x512xf32>
    %185 = vector.extract_strided_slice %184 {offsets = [0, 0], sizes = [2, 128], strides = [1, 1]} : vector<2x512xf32> to vector<2x128xf32>
    %cst_73 = arith.constant 5.000000e-01 : f32
    %186 = vector.broadcast %cst_73 : f32 to vector<2x128xf32>
    %187 = arith.mulf %186, %185 : vector<2x128xf32>
    %188 = math.tanh %187 : vector<2x128xf32>
    %cst_74 = arith.constant 5.000000e-01 : f32
    %189 = vector.broadcast %cst_74 : f32 to vector<2x128xf32>
    %190 = arith.mulf %189, %188 : vector<2x128xf32>
    %cst_75 = arith.constant 5.000000e-01 : f32
    %191 = vector.broadcast %cst_75 : f32 to vector<2x128xf32>
    %192 = arith.addf %190, %191 : vector<2x128xf32>
    %193 = vector.extract_strided_slice %184 {offsets = [0, 128], sizes = [2, 128], strides = [1, 1]} : vector<2x512xf32> to vector<2x128xf32>
    %cst_76 = arith.constant 5.000000e-01 : f32
    %194 = vector.broadcast %cst_76 : f32 to vector<2x128xf32>
    %195 = arith.mulf %194, %193 : vector<2x128xf32>
    %196 = math.tanh %195 : vector<2x128xf32>
    %cst_77 = arith.constant 5.000000e-01 : f32
    %197 = vector.broadcast %cst_77 : f32 to vector<2x128xf32>
    %198 = arith.mulf %197, %196 : vector<2x128xf32>
    %cst_78 = arith.constant 5.000000e-01 : f32
    %199 = vector.broadcast %cst_78 : f32 to vector<2x128xf32>
    %200 = arith.addf %198, %199 : vector<2x128xf32>
    %201 = vector.extract_strided_slice %184 {offsets = [0, 256], sizes = [2, 128], strides = [1, 1]} : vector<2x512xf32> to vector<2x128xf32>
    %202 = math.tanh %201 : vector<2x128xf32>
    %203 = vector.extract_strided_slice %184 {offsets = [0, 384], sizes = [2, 128], strides = [1, 1]} : vector<2x512xf32> to vector<2x128xf32>
    %cst_79 = arith.constant 5.000000e-01 : f32
    %204 = vector.broadcast %cst_79 : f32 to vector<2x128xf32>
    %205 = arith.mulf %204, %203 : vector<2x128xf32>
    %206 = math.tanh %205 : vector<2x128xf32>
    %cst_80 = arith.constant 5.000000e-01 : f32
    %207 = vector.broadcast %cst_80 : f32 to vector<2x128xf32>
    %208 = arith.mulf %207, %206 : vector<2x128xf32>
    %cst_81 = arith.constant 5.000000e-01 : f32
    %209 = vector.broadcast %cst_81 : f32 to vector<2x128xf32>
    %210 = arith.addf %208, %209 : vector<2x128xf32>
    %211 = arith.mulf %200, %170 : vector<2x128xf32>
    %212 = arith.mulf %192, %202 : vector<2x128xf32>
    %213 = arith.addf %211, %212 : vector<2x128xf32>
    %214 = math.tanh %213 : vector<2x128xf32>
    %215 = arith.mulf %210, %214 : vector<2x128xf32>
    %216 = arith.index_cast %c4_i32 : i32 to index
    %c0_82 = arith.constant 0 : index
    %c0_83 = arith.constant 0 : index
    %217 = vector.load %arg4[%216, %c0_82, %c0_83] : memref<8x2x128xf32, #tpu.memory_space<vmem>>, vector<1x2x128xf32>
    %218 = vector.shape_cast %217 : vector<1x2x128xf32> to vector<2x128xf32>
    %219 = vector.shape_cast %215 : vector<2x128xf32> to vector<1x2x128xf32>
    tpu.vector_store %arg4[%216, %c0_82, %c0_83], %219 {strides = array<i32>} : memref<8x2x128xf32, #tpu.memory_space<vmem>>, vector<1x2x128xf32>,
    %c5_i32 = arith.constant 5 : i32
    %c0_84 = arith.constant 0 : index
    %c0_85 = arith.constant 0 : index
    %220 = vector.load %arg3[%c0_84, %c0_85] : memref<128x512xbf16, #tpu.memory_space<vmem>>, vector<128x512xbf16>
    %221 = arith.truncf %215 : vector<2x128xf32> to vector<2x128xbf16>
    %cst_86 = arith.constant dense<0.000000e+00> : vector<2x512xf32>
    %222 = tpu.matmul %221, %220, %cst_86 {dimension_numbers = #tpu.dot_dimension_numbers<[1], [0], [0], [1], [0, 0, 1, 1], [], []>} : vector<2x128xbf16>, vector<128x512xbf16>, vector<2x512xf32> -> vector<2x512xf32>
    %223 = arith.index_cast %c5_i32 : i32 to index
    %c0_87 = arith.constant 0 : index
    %c0_88 = arith.constant 0 : index
    %224 = vector.load %arg2[%223, %c0_87, %c0_88] : memref<8x2x512xbf16, #tpu.memory_space<vmem>>, vector<1x2x512xbf16>
    %225 = vector.shape_cast %224 : vector<1x2x512xbf16> to vector<2x512xbf16>
    %226 = arith.extf %225 : vector<2x512xbf16> to vector<2x512xf32>
    %227 = arith.addf %226, %222 : vector<2x512xf32>
    %228 = vector.extract_strided_slice %227 {offsets = [0, 0], sizes = [2, 128], strides = [1, 1]} : vector<2x512xf32> to vector<2x128xf32>
    %cst_89 = arith.constant 5.000000e-01 : f32
    %229 = vector.broadcast %cst_89 : f32 to vector<2x128xf32>
    %230 = arith.mulf %229, %228 : vector<2x128xf32>
    %231 = math.tanh %230 : vector<2x128xf32>
    %cst_90 = arith.constant 5.000000e-01 : f32
    %232 = vector.broadcast %cst_90 : f32 to vector<2x128xf32>
    %233 = arith.mulf %232, %231 : vector<2x128xf32>
    %cst_91 = arith.constant 5.000000e-01 : f32
    %234 = vector.broadcast %cst_91 : f32 to vector<2x128xf32>
    %235 = arith.addf %233, %234 : vector<2x128xf32>
    %236 = vector.extract_strided_slice %227 {offsets = [0, 128], sizes = [2, 128], strides = [1, 1]} : vector<2x512xf32> to vector<2x128xf32>
    %cst_92 = arith.constant 5.000000e-01 : f32
    %237 = vector.broadcast %cst_92 : f32 to vector<2x128xf32>
    %238 = arith.mulf %237, %236 : vector<2x128xf32>
    %239 = math.tanh %238 : vector<2x128xf32>
    %cst_93 = arith.constant 5.000000e-01 : f32
    %240 = vector.broadcast %cst_93 : f32 to vector<2x128xf32>
    %241 = arith.mulf %240, %239 : vector<2x128xf32>
    %cst_94 = arith.constant 5.000000e-01 : f32
    %242 = vector.broadcast %cst_94 : f32 to vector<2x128xf32>
    %243 = arith.addf %241, %242 : vector<2x128xf32>
    %244 = vector.extract_strided_slice %227 {offsets = [0, 256], sizes = [2, 128], strides = [1, 1]} : vector<2x512xf32> to vector<2x128xf32>
    %245 = math.tanh %244 : vector<2x128xf32>
    %246 = vector.extract_strided_slice %227 {offsets = [0, 384], sizes = [2, 128], strides = [1, 1]} : vector<2x512xf32> to vector<2x128xf32>
    %cst_95 = arith.constant 5.000000e-01 : f32
    %247 = vector.broadcast %cst_95 : f32 to vector<2x128xf32>
    %248 = arith.mulf %247, %246 : vector<2x128xf32>
    %249 = math.tanh %248 : vector<2x128xf32>
    %cst_96 = arith.constant 5.000000e-01 : f32
    %250 = vector.broadcast %cst_96 : f32 to vector<2x128xf32>
    %251 = arith.mulf %250, %249 : vector<2x128xf32>
    %cst_97 = arith.constant 5.000000e-01 : f32
    %252 = vector.broadcast %cst_97 : f32 to vector<2x128xf32>
    %253 = arith.addf %251, %252 : vector<2x128xf32>
    %254 = arith.mulf %243, %213 : vector<2x128xf32>
    %255 = arith.mulf %235, %245 : vector<2x128xf32>
    %256 = arith.addf %254, %255 : vector<2x128xf32>
    %257 = math.tanh %256 : vector<2x128xf32>
    %258 = arith.mulf %253, %257 : vector<2x128xf32>
    %259 = arith.index_cast %c5_i32 : i32 to index
    %c0_98 = arith.constant 0 : index
    %c0_99 = arith.constant 0 : index
    %260 = vector.load %arg4[%259, %c0_98, %c0_99] : memref<8x2x128xf32, #tpu.memory_space<vmem>>, vector<1x2x128xf32>
    %261 = vector.shape_cast %260 : vector<1x2x128xf32> to vector<2x128xf32>
    %262 = vector.shape_cast %258 : vector<2x128xf32> to vector<1x2x128xf32>
    tpu.vector_store %arg4[%259, %c0_98, %c0_99], %262 {strides = array<i32>} : memref<8x2x128xf32, #tpu.memory_space<vmem>>, vector<1x2x128xf32>,
    %c6_i32 = arith.constant 6 : i32
    %c0_100 = arith.constant 0 : index
    %c0_101 = arith.constant 0 : index
    %263 = vector.load %arg3[%c0_100, %c0_101] : memref<128x512xbf16, #tpu.memory_space<vmem>>, vector<128x512xbf16>
    %264 = arith.truncf %258 : vector<2x128xf32> to vector<2x128xbf16>
    %cst_102 = arith.constant dense<0.000000e+00> : vector<2x512xf32>
    %265 = tpu.matmul %264, %263, %cst_102 {dimension_numbers = #tpu.dot_dimension_numbers<[1], [0], [0], [1], [0, 0, 1, 1], [], []>} : vector<2x128xbf16>, vector<128x512xbf16>, vector<2x512xf32> -> vector<2x512xf32>
    %266 = arith.index_cast %c6_i32 : i32 to index
    %c0_103 = arith.constant 0 : index
    %c0_104 = arith.constant 0 : index
    %267 = vector.load %arg2[%266, %c0_103, %c0_104] : memref<8x2x512xbf16, #tpu.memory_space<vmem>>, vector<1x2x512xbf16>
    %268 = vector.shape_cast %267 : vector<1x2x512xbf16> to vector<2x512xbf16>
    %269 = arith.extf %268 : vector<2x512xbf16> to vector<2x512xf32>
    %270 = arith.addf %269, %265 : vector<2x512xf32>
    %271 = vector.extract_strided_slice %270 {offsets = [0, 0], sizes = [2, 128], strides = [1, 1]} : vector<2x512xf32> to vector<2x128xf32>
    %cst_105 = arith.constant 5.000000e-01 : f32
    %272 = vector.broadcast %cst_105 : f32 to vector<2x128xf32>
    %273 = arith.mulf %272, %271 : vector<2x128xf32>
    %274 = math.tanh %273 : vector<2x128xf32>
    %cst_106 = arith.constant 5.000000e-01 : f32
    %275 = vector.broadcast %cst_106 : f32 to vector<2x128xf32>
    %276 = arith.mulf %275, %274 : vector<2x128xf32>
    %cst_107 = arith.constant 5.000000e-01 : f32
    %277 = vector.broadcast %cst_107 : f32 to vector<2x128xf32>
    %278 = arith.addf %276, %277 : vector<2x128xf32>
    %279 = vector.extract_strided_slice %270 {offsets = [0, 128], sizes = [2, 128], strides = [1, 1]} : vector<2x512xf32> to vector<2x128xf32>
    %cst_108 = arith.constant 5.000000e-01 : f32
    %280 = vector.broadcast %cst_108 : f32 to vector<2x128xf32>
    %281 = arith.mulf %280, %279 : vector<2x128xf32>
    %282 = math.tanh %281 : vector<2x128xf32>
    %cst_109 = arith.constant 5.000000e-01 : f32
    %283 = vector.broadcast %cst_109 : f32 to vector<2x128xf32>
    %284 = arith.mulf %283, %282 : vector<2x128xf32>
    %cst_110 = arith.constant 5.000000e-01 : f32
    %285 = vector.broadcast %cst_110 : f32 to vector<2x128xf32>
    %286 = arith.addf %284, %285 : vector<2x128xf32>
    %287 = vector.extract_strided_slice %270 {offsets = [0, 256], sizes = [2, 128], strides = [1, 1]} : vector<2x512xf32> to vector<2x128xf32>
    %288 = math.tanh %287 : vector<2x128xf32>
    %289 = vector.extract_strided_slice %270 {offsets = [0, 384], sizes = [2, 128], strides = [1, 1]} : vector<2x512xf32> to vector<2x128xf32>
    %cst_111 = arith.constant 5.000000e-01 : f32
    %290 = vector.broadcast %cst_111 : f32 to vector<2x128xf32>
    %291 = arith.mulf %290, %289 : vector<2x128xf32>
    %292 = math.tanh %291 : vector<2x128xf32>
    %cst_112 = arith.constant 5.000000e-01 : f32
    %293 = vector.broadcast %cst_112 : f32 to vector<2x128xf32>
    %294 = arith.mulf %293, %292 : vector<2x128xf32>
    %cst_113 = arith.constant 5.000000e-01 : f32
    %295 = vector.broadcast %cst_113 : f32 to vector<2x128xf32>
    %296 = arith.addf %294, %295 : vector<2x128xf32>
    %297 = arith.mulf %286, %256 : vector<2x128xf32>
    %298 = arith.mulf %278, %288 : vector<2x128xf32>
    %299 = arith.addf %297, %298 : vector<2x128xf32>
    %300 = math.tanh %299 : vector<2x128xf32>
    %301 = arith.mulf %296, %300 : vector<2x128xf32>
    %302 = arith.index_cast %c6_i32 : i32 to index
    %c0_114 = arith.constant 0 : index
    %c0_115 = arith.constant 0 : index
    %303 = vector.load %arg4[%302, %c0_114, %c0_115] : memref<8x2x128xf32, #tpu.memory_space<vmem>>, vector<1x2x128xf32>
    %304 = vector.shape_cast %303 : vector<1x2x128xf32> to vector<2x128xf32>
    %305 = vector.shape_cast %301 : vector<2x128xf32> to vector<1x2x128xf32>
    tpu.vector_store %arg4[%302, %c0_114, %c0_115], %305 {strides = array<i32>} : memref<8x2x128xf32, #tpu.memory_space<vmem>>, vector<1x2x128xf32>,
    %c7_i32 = arith.constant 7 : i32
    %c0_116 = arith.constant 0 : index
    %c0_117 = arith.constant 0 : index
    %306 = vector.load %arg3[%c0_116, %c0_117] : memref<128x512xbf16, #tpu.memory_space<vmem>>, vector<128x512xbf16>
    %307 = arith.truncf %301 : vector<2x128xf32> to vector<2x128xbf16>
    %cst_118 = arith.constant dense<0.000000e+00> : vector<2x512xf32>
    %308 = tpu.matmul %307, %306, %cst_118 {dimension_numbers = #tpu.dot_dimension_numbers<[1], [0], [0], [1], [0, 0, 1, 1], [], []>} : vector<2x128xbf16>, vector<128x512xbf16>, vector<2x512xf32> -> vector<2x512xf32>
    %309 = arith.index_cast %c7_i32 : i32 to index
    %c0_119 = arith.constant 0 : index
    %c0_120 = arith.constant 0 : index
    %310 = vector.load %arg2[%309, %c0_119, %c0_120] : memref<8x2x512xbf16, #tpu.memory_space<vmem>>, vector<1x2x512xbf16>
    %311 = vector.shape_cast %310 : vector<1x2x512xbf16> to vector<2x512xbf16>
    %312 = arith.extf %311 : vector<2x512xbf16> to vector<2x512xf32>
    %313 = arith.addf %312, %308 : vector<2x512xf32>
    %314 = vector.extract_strided_slice %313 {offsets = [0, 0], sizes = [2, 128], strides = [1, 1]} : vector<2x512xf32> to vector<2x128xf32>
    %cst_121 = arith.constant 5.000000e-01 : f32
    %315 = vector.broadcast %cst_121 : f32 to vector<2x128xf32>
    %316 = arith.mulf %315, %314 : vector<2x128xf32>
    %317 = math.tanh %316 : vector<2x128xf32>
    %cst_122 = arith.constant 5.000000e-01 : f32
    %318 = vector.broadcast %cst_122 : f32 to vector<2x128xf32>
    %319 = arith.mulf %318, %317 : vector<2x128xf32>
    %cst_123 = arith.constant 5.000000e-01 : f32
    %320 = vector.broadcast %cst_123 : f32 to vector<2x128xf32>
    %321 = arith.addf %319, %320 : vector<2x128xf32>
    %322 = vector.extract_strided_slice %313 {offsets = [0, 128], sizes = [2, 128], strides = [1, 1]} : vector<2x512xf32> to vector<2x128xf32>
    %cst_124 = arith.constant 5.000000e-01 : f32
    %323 = vector.broadcast %cst_124 : f32 to vector<2x128xf32>
    %324 = arith.mulf %323, %322 : vector<2x128xf32>
    %325 = math.tanh %324 : vector<2x128xf32>
    %cst_125 = arith.constant 5.000000e-01 : f32
    %326 = vector.broadcast %cst_125 : f32 to vector<2x128xf32>
    %327 = arith.mulf %326, %325 : vector<2x128xf32>
    %cst_126 = arith.constant 5.000000e-01 : f32
    %328 = vector.broadcast %cst_126 : f32 to vector<2x128xf32>
    %329 = arith.addf %327, %328 : vector<2x128xf32>
    %330 = vector.extract_strided_slice %313 {offsets = [0, 256], sizes = [2, 128], strides = [1, 1]} : vector<2x512xf32> to vector<2x128xf32>
    %331 = math.tanh %330 : vector<2x128xf32>
    %332 = vector.extract_strided_slice %313 {offsets = [0, 384], sizes = [2, 128], strides = [1, 1]} : vector<2x512xf32> to vector<2x128xf32>
    %cst_127 = arith.constant 5.000000e-01 : f32
    %333 = vector.broadcast %cst_127 : f32 to vector<2x128xf32>
    %334 = arith.mulf %333, %332 : vector<2x128xf32>
    %335 = math.tanh %334 : vector<2x128xf32>
    %cst_128 = arith.constant 5.000000e-01 : f32
    %336 = vector.broadcast %cst_128 : f32 to vector<2x128xf32>
    %337 = arith.mulf %336, %335 : vector<2x128xf32>
    %cst_129 = arith.constant 5.000000e-01 : f32
    %338 = vector.broadcast %cst_129 : f32 to vector<2x128xf32>
    %339 = arith.addf %337, %338 : vector<2x128xf32>
    %340 = arith.mulf %329, %299 : vector<2x128xf32>
    %341 = arith.mulf %321, %331 : vector<2x128xf32>
    %342 = arith.addf %340, %341 : vector<2x128xf32>
    %343 = math.tanh %342 : vector<2x128xf32>
    %344 = arith.mulf %339, %343 : vector<2x128xf32>
    %345 = arith.index_cast %c7_i32 : i32 to index
    %c0_130 = arith.constant 0 : index
    %c0_131 = arith.constant 0 : index
    %346 = vector.load %arg4[%345, %c0_130, %c0_131] : memref<8x2x128xf32, #tpu.memory_space<vmem>>, vector<1x2x128xf32>
    %347 = vector.shape_cast %346 : vector<1x2x128xf32> to vector<2x128xf32>
    %348 = vector.shape_cast %344 : vector<2x128xf32> to vector<1x2x128xf32>
    tpu.vector_store %arg4[%345, %c0_130, %c0_131], %348 {strides = array<i32>} : memref<8x2x128xf32, #tpu.memory_space<vmem>>, vector<1x2x128xf32>,
    %c8_i32 = arith.constant 8 : i32
    %c0_132 = arith.constant 0 : index
    %c0_133 = arith.constant 0 : index
    %349 = vector.load %arg5[%c0_132, %c0_133] : memref<2x128xf32, #tpu.memory_space<vmem>>, vector<2x128xf32>
    tpu.vector_store %arg5[%c0_132, %c0_133], %344 {strides = array<i32>} : memref<2x128xf32, #tpu.memory_space<vmem>>, vector<2x128xf32>,
    %c0_134 = arith.constant 0 : index
    %c0_135 = arith.constant 0 : index
    %350 = vector.load %arg6[%c0_134, %c0_135] : memref<2x128xf32, #tpu.memory_space<vmem>>, vector<2x128xf32>
    tpu.vector_store %arg6[%c0_134, %c0_135], %342 {strides = array<i32>} : memref<2x128xf32, #tpu.memory_space<vmem>>, vector<2x128xf32>,
    return
  }
  func.func @transform_0(%arg0: i32, %arg1: i32) -> (i32, i32, i32) {
    %c0_i32 = arith.constant 0 : i32
    %c0_i32_0 = arith.constant 0 : i32
    return %arg1, %arg0, %c0_i32 : i32, i32, i32
  }
  func.func @transform_1(%arg0: i32, %arg1: i32) -> (i32, i32) {
    %c0_i32 = arith.constant 0 : i32
    %c0_i32_0 = arith.constant 0 : i32
    %c0_i32_1 = arith.constant 0 : i32
    return %c0_i32, %c0_i32_0 : i32, i32
  }
  func.func @transform_2(%arg0: i32, %arg1: i32) -> (i32, i32, i32) {
    %c0_i32 = arith.constant 0 : i32
    %c0_i32_0 = arith.constant 0 : i32
    return %arg1, %arg0, %c0_i32 : i32, i32, i32
  }
}

</mosaic_0001>

<llo_original>
// kernel: lstm_module_forward.1
$region0: #{lstm_module_forward.1}
  #allocation0 [shape = 'u32[]', space=smem, size = 0x4, offset = 0x4, fixed_abs, tag = 'smem constant byte address 0x4 - core index']
  #allocation1 [shape = 'u32[144,128]{1,0:T(1,128)}', space=vmem, size = 0x12000, scoped, tag = 'internal scratch']
  #allocation2 [shape = 'f32[2,128]{1,0:T(2,128)}', space=vmem, size = 0x400, scoped, tag = 'scratch operand']
  #allocation3 [shape = 'f32[2,128]{1,0:T(2,128)}', space=vmem, size = 0x400, scoped, tag = 'scratch operand']
  %s0 = inlined_call_operand.vmem [shape: bf16[8,2,512], index: 0, kind: input, shape index: {}]
  %s1 = inlined_call_operand.vmem [shape: bf16[128,512], index: 1, kind: input, shape index: {}]
  %s2 = inlined_call_operand.vmem [shape: f32[8,2,128], index: 2, kind: output, shape index: {}]
  %s3 = sld [smem:[#allocation0]]
  $region22: #{lstm_module_forward.1} parent=0
    _
  %s5 = ssub.s32 1, %s3
  %s6 = scalar_select 0, %s5, %s3
  // Predicated region
  $region2: #{lstm_module_forward.1} parent=0 // pred_check
    _
  $region3: #{lstm_module_forward.1} parent=0 // pred_check_branch
    %8 = sbr.rel (0) target = $region5
  $region4: #{lstm_module_forward.1} parent=0 // pred_region
    _
  $region5: #{lstm_module_forward.1} parent=0 // pred_fallthru
    _
  // Predicated region
  $region6: #{lstm_module_forward.1} parent=0 // pred_check
    _
  $region7: #{lstm_module_forward.1} parent=0 // pred_check_branch
    %10 = sbr.rel (0) target = $region9
  $region8: #{lstm_module_forward.1} parent=0 // pred_region
    _
  $region9: #{lstm_module_forward.1} parent=0 // pred_fallthru
    _
  %p12 = scmp.eq.s32.totalorder 0, 0
  // Predicated region
  $region10: #{lstm_module_forward.1} parent=0 // pred_check
    %p13 = pneg %p12
  $region11: #{lstm_module_forward.1} parent=0 // pred_check_branch
    %15 = sbr.rel (%p13) target = $region13
  $region12: #{lstm_module_forward.1} parent=0 // pred_region
    %16 = vst [vmem:[#allocation2] sm:$0x3] 0.0
    %17 = vst [vmem:[#allocation3] sm:$0x3] 0.0
  $region13: #{lstm_module_forward.1} parent=0 // pred_fallthru
    _
  %v18 = vld [vmem:[#allocation2] sm:$0x3]
  %v19 = vld [vmem:[#allocation3] sm:$0x3]
  %v20 = vld [vmem:[%s1] sm:$0xff]
  %v21 = vld [vmem:[%s1 + $0x8] sm:$0xff]
  %v22 = vld [vmem:[%s1 + $0x10] sm:$0xff]
  %v23 = vld [vmem:[%s1 + $0x18] sm:$0xff]
  %v24 = vld [vmem:[%s1 + $0x20] sm:$0xff]
  %v25 = vld [vmem:[%s1 + $0x28] sm:$0xff]
  %v26 = vld [vmem:[%s1 + $0x30] sm:$0xff]
  %v27 = vld [vmem:[%s1 + $0x38] sm:$0xff]
  %v28 = vld [vmem:[%s1 + $0x40] sm:$0xff]
  %v29 = vld [vmem:[%s1 + $0x48] sm:$0xff]
  %v30 = vld [vmem:[%s1 + $0x50] sm:$0xff]
  %v31 = vld [vmem:[%s1 + $0x58] sm:$0xff]
  %v32 = vld [vmem:[%s1 + $0x60] sm:$0xff]
  %v33 = vld [vmem:[%s1 + $0x68] sm:$0xff]
  %v34 = vld [vmem:[%s1 + $0x70] sm:$0xff]
  %v35 = vld [vmem:[%s1 + $0x78] sm:$0xff]
  %v36 = vld [vmem:[%s1 + $0x80] sm:$0xff]
  %v37 = vld [vmem:[%s1 + $0x88] sm:$0xff]
  %v38 = vld [vmem:[%s1 + $0x90] sm:$0xff]
  %v39 = vld [vmem:[%s1 + $0x98] sm:$0xff]
  %v40 = vld [vmem:[%s1 + $0xa0] sm:$0xff]
  %v41 = vld [vmem:[%s1 + $0xa8] sm:$0xff]
  %v42 = vld [vmem:[%s1 + $0xb0] sm:$0xff]
  %v43 = vld [vmem:[%s1 + $0xb8] sm:$0xff]
  %v44 = vld [vmem:[%s1 + $0xc0] sm:$0xff]
  %v45 = vld [vmem:[%s1 + $0xc8] sm:$0xff]
  %v46 = vld [vmem:[%s1 + $0xd0] sm:$0xff]
  %v47 = vld [vmem:[%s1 + $0xd8] sm:$0xff]
  %v48 = vld [vmem:[%s1 + $0xe0] sm:$0xff]
  %v49 = vld [vmem:[%s1 + $0xe8] sm:$0xff]
  %v50 = vld [vmem:[%s1 + $0xf0] sm:$0xff]
  %v51 = vld [vmem:[%s1 + $0xf8] sm:$0xff]
  %v52 = vpack.c.bf16 %v18, %v18
  %v85 = vunpack.c.l.b16 %v20
  %v86 = vunpack.c.h.b16 %v20
  %v87 = vunpack.c.l.b16 %v21
  %v88 = vunpack.c.h.b16 %v21
  %v89 = vunpack.c.l.b16 %v22
  %v90 = vunpack.c.h.b16 %v22
  %v91 = vunpack.c.l.b16 %v23
  %v92 = vunpack.c.h.b16 %v23
  %v93 = vunpack.c.l.b16 %v24
  %v94 = vunpack.c.h.b16 %v24
  %v95 = vunpack.c.l.b16 %v25
  %v96 = vunpack.c.h.b16 %v25
  %v97 = vunpack.c.l.b16 %v26
  %v98 = vunpack.c.h.b16 %v26
  %v99 = vunpack.c.l.b16 %v27
  %v100 = vunpack.c.h.b16 %v27
  %v101 = vunpack.c.l.b16 %v28
  %v102 = vunpack.c.h.b16 %v28
  %v103 = vunpack.c.l.b16 %v29
  %v104 = vunpack.c.h.b16 %v29
  %v105 = vunpack.c.l.b16 %v30
  %v106 = vunpack.c.h.b16 %v30
  %v107 = vunpack.c.l.b16 %v31
  %v108 = vunpack.c.h.b16 %v31
  %v109 = vunpack.c.l.b16 %v32
  %v110 = vunpack.c.h.b16 %v32
  %v111 = vunpack.c.l.b16 %v33
  %v112 = vunpack.c.h.b16 %v33
  %v113 = vunpack.c.l.b16 %v34
  %v114 = vunpack.c.h.b16 %v34
  %v115 = vunpack.c.l.b16 %v35
  %v116 = vunpack.c.h.b16 %v35
  %v117 = vunpack.c.l.b16 %v36
  %v118 = vunpack.c.h.b16 %v36
  %v119 = vunpack.c.l.b16 %v37
  %v120 = vunpack.c.h.b16 %v37
  %v121 = vunpack.c.l.b16 %v38
  %v122 = vunpack.c.h.b16 %v38
  %v123 = vunpack.c.l.b16 %v39
  %v124 = vunpack.c.h.b16 %v39
  %v125 = vunpack.c.l.b16 %v40
  %v126 = vunpack.c.h.b16 %v40
  %v127 = vunpack.c.l.b16 %v41
  %v128 = vunpack.c.h.b16 %v41
  %v129 = vunpack.c.l.b16 %v42
  %v130 = vunpack.c.h.b16 %v42
  %v131 = vunpack.c.l.b16 %v43
  %v132 = vunpack.c.h.b16 %v43
  %v133 = vunpack.c.l.b16 %v44
  %v134 = vunpack.c.h.b16 %v44
  %v135 = vunpack.c.l.b16 %v45
  %v136 = vunpack.c.h.b16 %v45
  %v137 = vunpack.c.l.b16 %v46
  %v138 = vunpack.c.h.b16 %v46
  %v139 = vunpack.c.l.b16 %v47
  %v140 = vunpack.c.h.b16 %v47
  %v141 = vunpack.c.l.b16 %v48
  %v142 = vunpack.c.h.b16 %v48
  %v143 = vunpack.c.l.b16 %v49
  %v144 = vunpack.c.h.b16 %v49
  %v145 = vunpack.c.l.b16 %v50
  %v146 = vunpack.c.h.b16 %v50
  %v147 = vunpack.c.l.b16 %v51
  %v148 = vunpack.c.h.b16 %v51
  %v149 = vpack.c.b16 %v89, %v85
  %v150 = vpack.c.b16 %v90, %v86
  %v151 = vpack.c.b16 %v91, %v87
  %v152 = vpack.c.b16 %v92, %v88
  %v153 = vpack.c.b16 %v97, %v93
  %v154 = vpack.c.b16 %v98, %v94
  %v155 = vpack.c.b16 %v99, %v95
  %v156 = vpack.c.b16 %v100, %v96
  %v157 = vpack.c.b16 %v105, %v101
  %v158 = vpack.c.b16 %v106, %v102
  %v159 = vpack.c.b16 %v107, %v103
  %v160 = vpack.c.b16 %v108, %v104
  %v161 = vpack.c.b16 %v113, %v109
  %v162 = vpack.c.b16 %v114, %v110
  %v163 = vpack.c.b16 %v115, %v111
  %v164 = vpack.c.b16 %v116, %v112
  %v165 = vpack.c.b16 %v121, %v117
  %v166 = vpack.c.b16 %v122, %v118
  %v167 = vpack.c.b16 %v123, %v119
  %v168 = vpack.c.b16 %v124, %v120
  %v169 = vpack.c.b16 %v129, %v125
  %v170 = vpack.c.b16 %v130, %v126
  %v171 = vpack.c.b16 %v131, %v127
  %v172 = vpack.c.b16 %v132, %v128
  %v173 = vpack.c.b16 %v137, %v133
  %v174 = vpack.c.b16 %v138, %v134
  %v175 = vpack.c.b16 %v139, %v135
  %v176 = vpack.c.b16 %v140, %v136
  %v177 = vpack.c.b16 %v145, %v141
  %v178 = vpack.c.b16 %v146, %v142
  %v179 = vpack.c.b16 %v147, %v143
  %v180 = vpack.c.b16 %v148, %v144
  %213 = vmatprep.subr.bf16.mxu0 %v150
  %214 = vmatpush1.bf16.msra.mxu0 %v149
  %215 = vmatprep.subr.bf16.mxu0 %v154
  %216 = vmatpush1.bf16.msra.mxu0 %v153
  %217 = vmatprep.subr.bf16.mxu0 %v158
  %218 = vmatpush1.bf16.msra.mxu0 %v157
  %219 = vmatprep.subr.bf16.mxu0 %v162
  %220 = vmatpush1.bf16.msra.mxu0 %v161
  %221 = vmatprep.subr.bf16.mxu0 %v166
  %222 = vmatpush1.bf16.msra.mxu0 %v165
  %223 = vmatprep.subr.bf16.mxu0 %v170
  %224 = vmatpush1.bf16.msra.mxu0 %v169
  %225 = vmatprep.subr.bf16.mxu0 %v174
  %226 = vmatpush1.bf16.msra.mxu0 %v173
  %227 = vmatprep.subr.bf16.mxu0 %v178
  %228 = vmatpush1.bf16.msra.mxu0 %v177
  %229 = vmatprep.subr.bf16.mxu0 0
  %230 = vmatpush1.bf16.msra.mxu0 0
  %231 = vmatprep.subr.bf16.mxu0 0
  %232 = vmatpush1.bf16.msra.mxu0 0
  %233 = vmatprep.subr.bf16.mxu0 0
  %234 = vmatpush1.bf16.msra.mxu0 0
  %235 = vmatprep.subr.bf16.mxu0 0
  %236 = vmatpush1.bf16.msra.mxu0 0
  %237 = vmatprep.subr.bf16.mxu0 0
  %238 = vmatpush1.bf16.msra.mxu0 0
  %239 = vmatprep.subr.bf16.mxu0 0
  %240 = vmatpush1.bf16.msra.mxu0 0
  %241 = vmatprep.subr.bf16.mxu0 0
  %242 = vmatpush1.bf16.msra.mxu0 0
  %243 = vmatprep.subr.bf16.mxu0 0
  %244 = vmatpush1.bf16.msra.mxu0 0
  %245 = vmatprep.mubr.bf16.mxu0 0
  %246 = vmatmul.mubr.bf16.gmra.mrb[0].mxu0 %v52
  %v247 = vpop.f32.mrb[0].mxu0
  %v248 = vadd.f32 0.0, %v247
  %v249 = vpop.f32.mrb[0].mxu0
  %v250 = vadd.f32 0.0, %v249
  %v251 = vpop.f32.mrb[0].mxu0
  %v252 = vpop.f32.mrb[0].mxu0
  %253 = vdwg.mxu0
  %254 = vmatprep.subr.bf16.mxu0 %v152
  %255 = vmatpush1.bf16.msra.mxu0 %v151
  %256 = vmatprep.subr.bf16.mxu0 %v156
  %257 = vmatpush1.bf16.msra.mxu0 %v155
  %258 = vmatprep.subr.bf16.mxu0 %v160
  %259 = vmatpush1.bf16.msra.mxu0 %v159
  %260 = vmatprep.subr.bf16.mxu0 %v164
  %261 = vmatpush1.bf16.msra.mxu0 %v163
  %262 = vmatprep.subr.bf16.mxu0 %v168
  %263 = vmatpush1.bf16.msra.mxu0 %v167
  %264 = vmatprep.subr.bf16.mxu0 %v172
  %265 = vmatpush1.bf16.msra.mxu0 %v171
  %266 = vmatprep.subr.bf16.mxu0 %v176
  %267 = vmatpush1.bf16.msra.mxu0 %v175
  %268 = vmatprep.subr.bf16.mxu0 %v180
  %269 = vmatpush1.bf16.msra.mxu0 %v179
  %270 = vmatprep.subr.bf16.mxu0 0
  %271 = vmatpush1.bf16.msra.mxu0 0
  %272 = vmatprep.subr.bf16.mxu0 0
  %273 = vmatpush1.bf16.msra.mxu0 0
  %274 = vmatprep.subr.bf16.mxu0 0
  %275 = vmatpush1.bf16.msra.mxu0 0
  %276 = vmatprep.subr.bf16.mxu0 0
  %277 = vmatpush1.bf16.msra.mxu0 0
  %278 = vmatprep.subr.bf16.mxu0 0
  %279 = vmatpush1.bf16.msra.mxu0 0
  %280 = vmatprep.subr.bf16.mxu0 0
  %281 = vmatpush1.bf16.msra.mxu0 0
  %282 = vmatprep.subr.bf16.mxu0 0
  %283 = vmatpush1.bf16.msra.mxu0 0
  %284 = vmatprep.subr.bf16.mxu0 0
  %285 = vmatpush1.bf16.msra.mxu0 0
  %286 = vmatprep.mubr.bf16.mxu0 0
  %287 = vmatmul.mubr.bf16.gmra.mrb[0].mxu0 %v52
  %v288 = vpop.f32.mrb[0].mxu0
  %v289 = vadd.f32 0.0, %v288
  %v290 = vpop.f32.mrb[0].mxu0
  %v291 = vadd.f32 0.0, %v290
  %v292 = vpop.f32.mrb[0].mxu0
  %v293 = vpop.f32.mrb[0].mxu0
  %294 = vdwg.mxu0
  %v295 = vld [vmem:[%s0] sm:$0xf]
  %v296 = vunpack.c.l.bf16 %v295
  %v301 = vcombine.low %v248, %v250
  %v302 = vcombine.low %v289, %v291
  %v304 = vunpack.c.l.s4 1983009808
  %v305 = vunpack.c.0.s8 %v304
  %v306 = vlaneseq
  %v307 = vshrl.u32 %v306, 7
  %v308 = vsub.s32 %v305, %v307
  %v309 = vrot.slane %v301, %v308
  %v311 = vunpack.c.l.s4 1983009808
  %v312 = vunpack.c.0.s8 %v311
  %v313 = vlaneseq
  %v314 = vshrl.u32 %v313, 7
  %v315 = vsub.s32 %v312, %v314
  %v316 = vrot.slane %v302, %v315
  %v317 = vcombine.low %v309, %v316
  %v319 = vadd.f32 %v296, %v317
  %v320 = vmul.f32 %v319, 0.5
  %v321 = vtanh.pop %v320
  %v322 = vmul.f32 %v321, 0.5
  %v323 = vadd.f32 %v322, 0.5
  %v325 = vrot.slane %v319, 2
  %v327 = vmul.f32 %v325, 0.5
  %v328 = vtanh.pop %v327
  %v329 = vmul.f32 %v328, 0.5
  %v330 = vadd.f32 %v329, 0.5
  %v331 = vrot.slane %v319, 4
  %v333 = vtanh.pop %v331
  %v334 = vrot.slane %v319, 6
  %v336 = vmul.f32 %v334, 0.5
  %v337 = vtanh.pop %v336
  %v338 = vmul.f32 %v337, 0.5
  %v339 = vadd.f32 %v338, 0.5
  %v340 = vmul.f32 %v330, %v19
  %v341 = vmul.f32 %v323, %v333
  %v342 = vadd.f32 %v340, %v341
  %v343 = vtanh.pop %v342
  %v344 = vmul.f32 %v339, %v343
  %345 = vst [vmem:[%s2] sm:$0x3] %v344
  %v346 = vld [vmem:[%s1] sm:$0xff]
  %v347 = vld [vmem:[%s1 + $0x8] sm:$0xff]
  %v348 = vld [vmem:[%s1 + $0x10] sm:$0xff]
  %v349 = vld [vmem:[%s1 + $0x18] sm:$0xff]
  %v350 = vld [vmem:[%s1 + $0x20] sm:$0xff]
  %v351 = vld [vmem:[%s1 + $0x28] sm:$0xff]
  %v352 = vld [vmem:[%s1 + $0x30] sm:$0xff]
  %v353 = vld [vmem:[%s1 + $0x38] sm:$0xff]
  %v354 = vld [vmem:[%s1 + $0x40] sm:$0xff]
  %v355 = vld [vmem:[%s1 + $0x48] sm:$0xff]
  %v356 = vld [vmem:[%s1 + $0x50] sm:$0xff]
  %v357 = vld [vmem:[%s1 + $0x58] sm:$0xff]
  %v358 = vld [vmem:[%s1 + $0x60] sm:$0xff]
  %v359 = vld [vmem:[%s1 + $0x68] sm:$0xff]
  %v360 = vld [vmem:[%s1 + $0x70] sm:$0xff]
  %v361 = vld [vmem:[%s1 + $0x78] sm:$0xff]
  %v362 = vld [vmem:[%s1 + $0x80] sm:$0xff]
  %v363 = vld [vmem:[%s1 + $0x88] sm:$0xff]
  %v364 = vld [vmem:[%s1 + $0x90] sm:$0xff]
  %v365 = vld [vmem:[%s1 + $0x98] sm:$0xff]
  %v366 = vld [vmem:[%s1 + $0xa0] sm:$0xff]
  %v367 = vld [vmem:[%s1 + $0xa8] sm:$0xff]
  %v368 = vld [vmem:[%s1 + $0xb0] sm:$0xff]
  %v369 = vld [vmem:[%s1 + $0xb8] sm:$0xff]
  %v370 = vld [vmem:[%s1 + $0xc0] sm:$0xff]
  %v371 = vld [vmem:[%s1 + $0xc8] sm:$0xff]
  %v372 = vld [vmem:[%s1 + $0xd0] sm:$0xff]
  %v373 = vld [vmem:[%s1 + $0xd8] sm:$0xff]
  %v374 = vld [vmem:[%s1 + $0xe0] sm:$0xff]
  %v375 = vld [vmem:[%s1 + $0xe8] sm:$0xff]
  %v376 = vld [vmem:[%s1 + $0xf0] sm:$0xff]
  %v377 = vld [vmem:[%s1 + $0xf8] sm:$0xff]
  %v378 = vpack.c.bf16 %v344, %v344
  %v411 = vunpack.c.l.b16 %v346
  %v412 = vunpack.c.h.b16 %v346
  %v413 = vunpack.c.l.b16 %v347
  %v414 = vunpack.c.h.b16 %v347
  %v415 = vunpack.c.l.b16 %v348
  %v416 = vunpack.c.h.b16 %v348
  %v417 = vunpack.c.l.b16 %v349
  %v418 = vunpack.c.h.b16 %v349
  %v419 = vunpack.c.l.b16 %v350
  %v420 = vunpack.c.h.b16 %v350
  %v421 = vunpack.c.l.b16 %v351
  %v422 = vunpack.c.h.b16 %v351
  %v423 = vunpack.c.l.b16 %v352
  %v424 = vunpack.c.h.b16 %v352
  %v425 = vunpack.c.l.b16 %v353
  %v426 = vunpack.c.h.b16 %v353
  %v427 = vunpack.c.l.b16 %v354
  %v428 = vunpack.c.h.b16 %v354
  %v429 = vunpack.c.l.b16 %v355
  %v430 = vunpack.c.h.b16 %v355
  %v431 = vunpack.c.l.b16 %v356
  %v432 = vunpack.c.h.b16 %v356
  %v433 = vunpack.c.l.b16 %v357
  %v434 = vunpack.c.h.b16 %v357
  %v435 = vunpack.c.l.b16 %v358
  %v436 = vunpack.c.h.b16 %v358
  %v437 = vunpack.c.l.b16 %v359
  %v438 = vunpack.c.h.b16 %v359
  %v439 = vunpack.c.l.b16 %v360
  %v440 = vunpack.c.h.b16 %v360
  %v441 = vunpack.c.l.b16 %v361
  %v442 = vunpack.c.h.b16 %v361
  %v443 = vunpack.c.l.b16 %v362
  %v444 = vunpack.c.h.b16 %v362
  %v445 = vunpack.c.l.b16 %v363
  %v446 = vunpack.c.h.b16 %v363
  %v447 = vunpack.c.l.b16 %v364
  %v448 = vunpack.c.h.b16 %v364
  %v449 = vunpack.c.l.b16 %v365
  %v450 = vunpack.c.h.b16 %v365
  %v451 = vunpack.c.l.b16 %v366
  %v452 = vunpack.c.h.b16 %v366
  %v453 = vunpack.c.l.b16 %v367
  %v454 = vunpack.c.h.b16 %v367
  %v455 = vunpack.c.l.b16 %v368
  %v456 = vunpack.c.h.b16 %v368
  %v457 = vunpack.c.l.b16 %v369
  %v458 = vunpack.c.h.b16 %v369
  %v459 = vunpack.c.l.b16 %v370
  %v460 = vunpack.c.h.b16 %v370
  %v461 = vunpack.c.l.b16 %v371
  %v462 = vunpack.c.h.b16 %v371
  %v463 = vunpack.c.l.b16 %v372
  %v464 = vunpack.c.h.b16 %v372
  %v465 = vunpack.c.l.b16 %v373
  %v466 = vunpack.c.h.b16 %v373
  %v467 = vunpack.c.l.b16 %v374
  %v468 = vunpack.c.h.b16 %v374
  %v469 = vunpack.c.l.b16 %v375
  %v470 = vunpack.c.h.b16 %v375
  %v471 = vunpack.c.l.b16 %v376
  %v472 = vunpack.c.h.b16 %v376
  %v473 = vunpack.c.l.b16 %v377
  %v474 = vunpack.c.h.b16 %v377
  %v475 = vpack.c.b16 %v415, %v411
  %v476 = vpack.c.b16 %v416, %v412
  %v477 = vpack.c.b16 %v417, %v413
  %v478 = vpack.c.b16 %v418, %v414
  %v479 = vpack.c.b16 %v423, %v419
  %v480 = vpack.c.b16 %v424, %v420
  %v481 = vpack.c.b16 %v425, %v421
  %v482 = vpack.c.b16 %v426, %v422
  %v483 = vpack.c.b16 %v431, %v427
  %v484 = vpack.c.b16 %v432, %v428
  %v485 = vpack.c.b16 %v433, %v429
  %v486 = vpack.c.b16 %v434, %v430
  %v487 = vpack.c.b16 %v439, %v435
  %v488 = vpack.c.b16 %v440, %v436
  %v489 = vpack.c.b16 %v441, %v437
  %v490 = vpack.c.b16 %v442, %v438
  %v491 = vpack.c.b16 %v447, %v443
  %v492 = vpack.c.b16 %v448, %v444
  %v493 = vpack.c.b16 %v449, %v445
  %v494 = vpack.c.b16 %v450, %v446
  %v495 = vpack.c.b16 %v455, %v451
  %v496 = vpack.c.b16 %v456, %v452
  %v497 = vpack.c.b16 %v457, %v453
  %v498 = vpack.c.b16 %v458, %v454
  %v499 = vpack.c.b16 %v463, %v459
  %v500 = vpack.c.b16 %v464, %v460
  %v501 = vpack.c.b16 %v465, %v461
  %v502 = vpack.c.b16 %v466, %v462
  %v503 = vpack.c.b16 %v471, %v467
  %v504 = vpack.c.b16 %v472, %v468
  %v505 = vpack.c.b16 %v473, %v469
  %v506 = vpack.c.b16 %v474, %v470
  %539 = vmatprep.subr.bf16.mxu0 %v476
  %540 = vmatpush1.bf16.msra.mxu0 %v475
  %541 = vmatprep.subr.bf16.mxu0 %v480
  %542 = vmatpush1.bf16.msra.mxu0 %v479
  %543 = vmatprep.subr.bf16.mxu0 %v484
  %544 = vmatpush1.bf16.msra.mxu0 %v483
  %545 = vmatprep.subr.bf16.mxu0 %v488
  %546 = vmatpush1.bf16.msra.mxu0 %v487
  %547 = vmatprep.subr.bf16.mxu0 %v492
  %548 = vmatpush1.bf16.msra.mxu0 %v491
  %549 = vmatprep.subr.bf16.mxu0 %v496
  %550 = vmatpush1.bf16.msra.mxu0 %v495
  %551 = vmatprep.subr.bf16.mxu0 %v500
  %552 = vmatpush1.bf16.msra.mxu0 %v499
  %553 = vmatprep.subr.bf16.mxu0 %v504
  %554 = vmatpush1.bf16.msra.mxu0 %v503
  %555 = vmatprep.subr.bf16.mxu0 0
  %556 = vmatpush1.bf16.msra.mxu0 0
  %557 = vmatprep.subr.bf16.mxu0 0
  %558 = vmatpush1.bf16.msra.mxu0 0
  %559 = vmatprep.subr.bf16.mxu0 0
  %560 = vmatpush1.bf16.msra.mxu0 0
  %561 = vmatprep.subr.bf16.mxu0 0
  %562 = vmatpush1.bf16.msra.mxu0 0
  %563 = vmatprep.subr.bf16.mxu0 0
  %564 = vmatpush1.bf16.msra.mxu0 0
  %565 = vmatprep.subr.bf16.mxu0 0
  %566 = vmatpush1.bf16.msra.mxu0 0
  %567 = vmatprep.subr.bf16.mxu0 0
  %568 = vmatpush1.bf16.msra.mxu0 0
  %569 = vmatprep.subr.bf16.mxu0 0
  %570 = vmatpush1.bf16.msra.mxu0 0
  %571 = vmatprep.mubr.bf16.mxu0 0
  %572 = vmatmul.mubr.bf16.gmra.mrb[0].mxu0 %v378
  %v573 = vpop.f32.mrb[0].mxu0
  %v574 = vadd.f32 0.0, %v573
  %v575 = vpop.f32.mrb[0].mxu0
  %v576 = vadd.f32 0.0, %v575
  %v577 = vpop.f32.mrb[0].mxu0
  %v578 = vpop.f32.mrb[0].mxu0
  %579 = vdwg.mxu0
  %580 = vmatprep.subr.bf16.mxu0 %v478
  %581 = vmatpush1.bf16.msra.mxu0 %v477
  %582 = vmatprep.subr.bf16.mxu0 %v482
  %583 = vmatpush1.bf16.msra.mxu0 %v481
  %584 = vmatprep.subr.bf16.mxu0 %v486
  %585 = vmatpush1.bf16.msra.mxu0 %v485
  %586 = vmatprep.subr.bf16.mxu0 %v490
  %587 = vmatpush1.bf16.msra.mxu0 %v489
  %588 = vmatprep.subr.bf16.mxu0 %v494
  %589 = vmatpush1.bf16.msra.mxu0 %v493
  %590 = vmatprep.subr.bf16.mxu0 %v498
  %591 = vmatpush1.bf16.msra.mxu0 %v497
  %592 = vmatprep.subr.bf16.mxu0 %v502
  %593 = vmatpush1.bf16.msra.mxu0 %v501
  %594 = vmatprep.subr.bf16.mxu0 %v506
  %595 = vmatpush1.bf16.msra.mxu0 %v505
  %596 = vmatprep.subr.bf16.mxu0 0
  %597 = vmatpush1.bf16.msra.mxu0 0
  %598 = vmatprep.subr.bf16.mxu0 0
  %599 = vmatpush1.bf16.msra.mxu0 0
  %600 = vmatprep.subr.bf16.mxu0 0
  %601 = vmatpush1.bf16.msra.mxu0 0
  %602 = vmatprep.subr.bf16.mxu0 0
  %603 = vmatpush1.bf16.msra.mxu0 0
  %604 = vmatprep.subr.bf16.mxu0 0
  %605 = vmatpush1.bf16.msra.mxu0 0
  %606 = vmatprep.subr.bf16.mxu0 0
  %607 = vmatpush1.bf16.msra.mxu0 0
  %608 = vmatprep.subr.bf16.mxu0 0
  %609 = vmatpush1.bf16.msra.mxu0 0
  %610 = vmatprep.subr.bf16.mxu0 0
  %611 = vmatpush1.bf16.msra.mxu0 0
  %612 = vmatprep.mubr.bf16.mxu0 0
  %613 = vmatmul.mubr.bf16.gmra.mrb[0].mxu0 %v378
  %v614 = vpop.f32.mrb[0].mxu0
  %v615 = vadd.f32 0.0, %v614
  %v616 = vpop.f32.mrb[0].mxu0
  %v617 = vadd.f32 0.0, %v616
  %v618 = vpop.f32.mrb[0].mxu0
  %v619 = vpop.f32.mrb[0].mxu0
  %620 = vdwg.mxu0
  %s621 = scalar_lea.vmem %s0, 4
  %v622 = vld [vmem:[%s621] sm:$0xf]
  %v623 = vunpack.c.l.bf16 %v622
  %v628 = vcombine.low %v574, %v576
  %v629 = vcombine.low %v615, %v617
  %v631 = vunpack.c.l.s4 1983009808
  %v632 = vunpack.c.0.s8 %v631
  %v633 = vlaneseq
  %v634 = vshrl.u32 %v633, 7
  %v635 = vsub.s32 %v632, %v634
  %v636 = vrot.slane %v628, %v635
  %v638 = vunpack.c.l.s4 1983009808
  %v639 = vunpack.c.0.s8 %v638
  %v640 = vlaneseq
  %v641 = vshrl.u32 %v640, 7
  %v642 = vsub.s32 %v639, %v641
  %v643 = vrot.slane %v629, %v642
  %v644 = vcombine.low %v636, %v643
  %v646 = vadd.f32 %v623, %v644
  %v647 = vmul.f32 %v646, 0.5
  %v648 = vtanh.pop %v647
  %v649 = vmul.f32 %v648, 0.5
  %v650 = vadd.f32 %v649, 0.5
  %v652 = vrot.slane %v646, 2
  %v654 = vmul.f32 %v652, 0.5
  %v655 = vtanh.pop %v654
  %v656 = vmul.f32 %v655, 0.5
  %v657 = vadd.f32 %v656, 0.5
  %v658 = vrot.slane %v646, 4
  %v660 = vtanh.pop %v658
  %v661 = vrot.slane %v646, 6
  %v663 = vmul.f32 %v661, 0.5
  %v664 = vtanh.pop %v663
  %v665 = vmul.f32 %v664, 0.5
  %v666 = vadd.f32 %v665, 0.5
  %v667 = vmul.f32 %v657, %v342
  %v668 = vmul.f32 %v650, %v660
  %v669 = vadd.f32 %v667, %v668
  %v670 = vtanh.pop %v669
  %v671 = vmul.f32 %v666, %v670
  %s672 = scalar_lea.vmem %s2, 2
  %673 = vst [vmem:[%s672] sm:$0x3] %v671
  %v674 = vld [vmem:[%s1] sm:$0xff]
  %v675 = vld [vmem:[%s1 + $0x8] sm:$0xff]
  %v676 = vld [vmem:[%s1 + $0x10] sm:$0xff]
  %v677 = vld [vmem:[%s1 + $0x18] sm:$0xff]
  %v678 = vld [vmem:[%s1 + $0x20] sm:$0xff]
  %v679 = vld [vmem:[%s1 + $0x28] sm:$0xff]
  %v680 = vld [vmem:[%s1 + $0x30] sm:$0xff]
  %v681 = vld [vmem:[%s1 + $0x38] sm:$0xff]
  %v682 = vld [vmem:[%s1 + $0x40] sm:$0xff]
  %v683 = vld [vmem:[%s1 + $0x48] sm:$0xff]
  %v684 = vld [vmem:[%s1 + $0x50] sm:$0xff]
  %v685 = vld [vmem:[%s1 + $0x58] sm:$0xff]
  %v686 = vld [vmem:[%s1 + $0x60] sm:$0xff]
  %v687 = vld [vmem:[%s1 + $0x68] sm:$0xff]
  %v688 = vld [vmem:[%s1 + $0x70] sm:$0xff]
  %v689 = vld [vmem:[%s1 + $0x78] sm:$0xff]
  %v690 = vld [vmem:[%s1 + $0x80] sm:$0xff]
  %v691 = vld [vmem:[%s1 + $0x88] sm:$0xff]
  %v692 = vld [vmem:[%s1 + $0x90] sm:$0xff]
  %v693 = vld [vmem:[%s1 + $0x98] sm:$0xff]
  %v694 = vld [vmem:[%s1 + $0xa0] sm:$0xff]
  %v695 = vld [vmem:[%s1 + $0xa8] sm:$0xff]
  %v696 = vld [vmem:[%s1 + $0xb0] sm:$0xff]
  %v697 = vld [vmem:[%s1 + $0xb8] sm:$0xff]
  %v698 = vld [vmem:[%s1 + $0xc0] sm:$0xff]
  %v699 = vld [vmem:[%s1 + $0xc8] sm:$0xff]
  %v700 = vld [vmem:[%s1 + $0xd0] sm:$0xff]
  %v701 = vld [vmem:[%s1 + $0xd8] sm:$0xff]
  %v702 = vld [vmem:[%s1 + $0xe0] sm:$0xff]
  %v703 = vld [vmem:[%s1 + $0xe8] sm:$0xff]
  %v704 = vld [vmem:[%s1 + $0xf0] sm:$0xff]
  %v705 = vld [vmem:[%s1 + $0xf8] sm:$0xff]
  %v706 = vpack.c.bf16 %v671, %v671
  %v739 = vunpack.c.l.b16 %v674
  %v740 = vunpack.c.h.b16 %v674
  %v741 = vunpack.c.l.b16 %v675
  %v742 = vunpack.c.h.b16 %v675
  %v743 = vunpack.c.l.b16 %v676
  %v744 = vunpack.c.h.b16 %v676
  %v745 = vunpack.c.l.b16 %v677
  %v746 = vunpack.c.h.b16 %v677
  %v747 = vunpack.c.l.b16 %v678
  %v748 = vunpack.c.h.b16 %v678
  %v749 = vunpack.c.l.b16 %v679
  %v750 = vunpack.c.h.b16 %v679
  %v751 = vunpack.c.l.b16 %v680
  %v752 = vunpack.c.h.b16 %v680
  %v753 = vunpack.c.l.b16 %v681
  %v754 = vunpack.c.h.b16 %v681
  %v755 = vunpack.c.l.b16 %v682
  %v756 = vunpack.c.h.b16 %v682
  %v757 = vunpack.c.l.b16 %v683
  %v758 = vunpack.c.h.b16 %v683
  %v759 = vunpack.c.l.b16 %v684
  %v760 = vunpack.c.h.b16 %v684
  %v761 = vunpack.c.l.b16 %v685
  %v762 = vunpack.c.h.b16 %v685
  %v763 = vunpack.c.l.b16 %v686
  %v764 = vunpack.c.h.b16 %v686
  %v765 = vunpack.c.l.b16 %v687
  %v766 = vunpack.c.h.b16 %v687
  %v767 = vunpack.c.l.b16 %v688
  %v768 = vunpack.c.h.b16 %v688
  %v769 = vunpack.c.l.b16 %v689
  %v770 = vunpack.c.h.b16 %v689
  %v771 = vunpack.c.l.b16 %v690
  %v772 = vunpack.c.h.b16 %v690
  %v773 = vunpack.c.l.b16 %v691
  %v774 = vunpack.c.h.b16 %v691
  %v775 = vunpack.c.l.b16 %v692
  %v776 = vunpack.c.h.b16 %v692
  %v777 = vunpack.c.l.b16 %v693
  %v778 = vunpack.c.h.b16 %v693
  %v779 = vunpack.c.l.b16 %v694
  %v780 = vunpack.c.h.b16 %v694
  %v781 = vunpack.c.l.b16 %v695
  %v782 = vunpack.c.h.b16 %v695
  %v783 = vunpack.c.l.b16 %v696
  %v784 = vunpack.c.h.b16 %v696
  %v785 = vunpack.c.l.b16 %v697
  %v786 = vunpack.c.h.b16 %v697
  %v787 = vunpack.c.l.b16 %v698
  %v788 = vunpack.c.h.b16 %v698
  %v789 = vunpack.c.l.b16 %v699
  %v790 = vunpack.c.h.b16 %v699
  %v791 = vunpack.c.l.b16 %v700
  %v792 = vunpack.c.h.b16 %v700
  %v793 = vunpack.c.l.b16 %v701
  %v794 = vunpack.c.h.b16 %v701
  %v795 = vunpack.c.l.b16 %v702
  %v796 = vunpack.c.h.b16 %v702
  %v797 = vunpack.c.l.b16 %v703
  %v798 = vunpack.c.h.b16 %v703
  %v799 = vunpack.c.l.b16 %v704
  %v800 = vunpack.c.h.b16 %v704
  %v801 = vunpack.c.l.b16 %v705
  %v802 = vunpack.c.h.b16 %v705
  %v803 = vpack.c.b16 %v743, %v739
  %v804 = vpack.c.b16 %v744, %v740
  %v805 = vpack.c.b16 %v745, %v741
  %v806 = vpack.c.b16 %v746, %v742
  %v807 = vpack.c.b16 %v751, %v747
  %v808 = vpack.c.b16 %v752, %v748
  %v809 = vpack.c.b16 %v753, %v749
  %v810 = vpack.c.b16 %v754, %v750
  %v811 = vpack.c.b16 %v759, %v755
  %v812 = vpack.c.b16 %v760, %v756
  %v813 = vpack.c.b16 %v761, %v757
  %v814 = vpack.c.b16 %v762, %v758
  %v815 = vpack.c.b16 %v767, %v763
  %v816 = vpack.c.b16 %v768, %v764
  %v817 = vpack.c.b16 %v769, %v765
  %v818 = vpack.c.b16 %v770, %v766
  %v819 = vpack.c.b16 %v775, %v771
  %v820 = vpack.c.b16 %v776, %v772
  %v821 = vpack.c.b16 %v777, %v773
  %v822 = vpack.c.b16 %v778, %v774
  %v823 = vpack.c.b16 %v783, %v779
  %v824 = vpack.c.b16 %v784, %v780
  %v825 = vpack.c.b16 %v785, %v781
  %v826 = vpack.c.b16 %v786, %v782
  %v827 = vpack.c.b16 %v791, %v787
  %v828 = vpack.c.b16 %v792, %v788
  %v829 = vpack.c.b16 %v793, %v789
  %v830 = vpack.c.b16 %v794, %v790
  %v831 = vpack.c.b16 %v799, %v795
  %v832 = vpack.c.b16 %v800, %v796
  %v833 = vpack.c.b16 %v801, %v797
  %v834 = vpack.c.b16 %v802, %v798
  %867 = vmatprep.subr.bf16.mxu0 %v804
  %868 = vmatpush1.bf16.msra.mxu0 %v803
  %869 = vmatprep.subr.bf16.mxu0 %v808
  %870 = vmatpush1.bf16.msra.mxu0 %v807
  %871 = vmatprep.subr.bf16.mxu0 %v812
  %872 = vmatpush1.bf16.msra.mxu0 %v811
  %873 = vmatprep.subr.bf16.mxu0 %v816
  %874 = vmatpush1.bf16.msra.mxu0 %v815
  %875 = vmatprep.subr.bf16.mxu0 %v820
  %876 = vmatpush1.bf16.msra.mxu0 %v819
  %877 = vmatprep.subr.bf16.mxu0 %v824
  %878 = vmatpush1.bf16.msra.mxu0 %v823
  %879 = vmatprep.subr.bf16.mxu0 %v828
  %880 = vmatpush1.bf16.msra.mxu0 %v827
  %881 = vmatprep.subr.bf16.mxu0 %v832
  %882 = vmatpush1.bf16.msra.mxu0 %v831
  %883 = vmatprep.subr.bf16.mxu0 0
  %884 = vmatpush1.bf16.msra.mxu0 0
  %885 = vmatprep.subr.bf16.mxu0 0
  %886 = vmatpush1.bf16.msra.mxu0 0
  %887 = vmatprep.subr.bf16.mxu0 0
  %888 = vmatpush1.bf16.msra.mxu0 0
  %889 = vmatprep.subr.bf16.mxu0 0
  %890 = vmatpush1.bf16.msra.mxu0 0
  %891 = vmatprep.subr.bf16.mxu0 0
  %892 = vmatpush1.bf16.msra.mxu0 0
  %893 = vmatprep.subr.bf16.mxu0 0
  %894 = vmatpush1.bf16.msra.mxu0 0
  %895 = vmatprep.subr.bf16.mxu0 0
  %896 = vmatpush1.bf16.msra.mxu0 0
  %897 = vmatprep.subr.bf16.mxu0 0
  %898 = vmatpush1.bf16.msra.mxu0 0
  %899 = vmatprep.mubr.bf16.mxu0 0
  %900 = vmatmul.mubr.bf16.gmra.mrb[0].mxu0 %v706
  %v901 = vpop.f32.mrb[0].mxu0
  %v902 = vadd.f32 0.0, %v901
  %v903 = vpop.f32.mrb[0].mxu0
  %v904 = vadd.f32 0.0, %v903
  %v905 = vpop.f32.mrb[0].mxu0
  %v906 = vpop.f32.mrb[0].mxu0
  %907 = vdwg.mxu0
  %908 = vmatprep.subr.bf16.mxu0 %v806
  %909 = vmatpush1.bf16.msra.mxu0 %v805
  %910 = vmatprep.subr.bf16.mxu0 %v810
  %911 = vmatpush1.bf16.msra.mxu0 %v809
  %912 = vmatprep.subr.bf16.mxu0 %v814
  %913 = vmatpush1.bf16.msra.mxu0 %v813
  %914 = vmatprep.subr.bf16.mxu0 %v818
  %915 = vmatpush1.bf16.msra.mxu0 %v817
  %916 = vmatprep.subr.bf16.mxu0 %v822
  %917 = vmatpush1.bf16.msra.mxu0 %v821
  %918 = vmatprep.subr.bf16.mxu0 %v826
  %919 = vmatpush1.bf16.msra.mxu0 %v825
  %920 = vmatprep.subr.bf16.mxu0 %v830
  %921 = vmatpush1.bf16.msra.mxu0 %v829
  %922 = vmatprep.subr.bf16.mxu0 %v834
  %923 = vmatpush1.bf16.msra.mxu0 %v833
  %924 = vmatprep.subr.bf16.mxu0 0
  %925 = vmatpush1.bf16.msra.mxu0 0
  %926 = vmatprep.subr.bf16.mxu0 0
  %927 = vmatpush1.bf16.msra.mxu0 0
  %928 = vmatprep.subr.bf16.mxu0 0
  %929 = vmatpush1.bf16.msra.mxu0 0
  %930 = vmatprep.subr.bf16.mxu0 0
  %931 = vmatpush1.bf16.msra.mxu0 0
  %932 = vmatprep.subr.bf16.mxu0 0
  %933 = vmatpush1.bf16.msra.mxu0 0
  %934 = vmatprep.subr.bf16.mxu0 0
  %935 = vmatpush1.bf16.msra.mxu0 0
  %936 = vmatprep.subr.bf16.mxu0 0
  %937 = vmatpush1.bf16.msra.mxu0 0
  %938 = vmatprep.subr.bf16.mxu0 0
  %939 = vmatpush1.bf16.msra.mxu0 0
  %940 = vmatprep.mubr.bf16.mxu0 0
  %941 = vmatmul.mubr.bf16.gmra.mrb[0].mxu0 %v706
  %v942 = vpop.f32.mrb[0].mxu0
  %v943 = vadd.f32 0.0, %v942
  %v944 = vpop.f32.mrb[0].mxu0
  %v945 = vadd.f32 0.0, %v944
  %v946 = vpop.f32.mrb[0].mxu0
  %v947 = vpop.f32.mrb[0].mxu0
  %948 = vdwg.mxu0
  %s949 = scalar_lea.vmem %s0, 8
  %v950 = vld [vmem:[%s949] sm:$0xf]
  %v951 = vunpack.c.l.bf16 %v950
  %v956 = vcombine.low %v902, %v904
  %v957 = vcombine.low %v943, %v945
  %v959 = vunpack.c.l.s4 1983009808
  %v960 = vunpack.c.0.s8 %v959
  %v961 = vlaneseq
  %v962 = vshrl.u32 %v961, 7
  %v963 = vsub.s32 %v960, %v962
  %v964 = vrot.slane %v956, %v963
  %v966 = vunpack.c.l.s4 1983009808
  %v967 = vunpack.c.0.s8 %v966
  %v968 = vlaneseq
  %v969 = vshrl.u32 %v968, 7
  %v970 = vsub.s32 %v967, %v969
  %v971 = vrot.slane %v957, %v970
  %v972 = vcombine.low %v964, %v971
  %v974 = vadd.f32 %v951, %v972
  %v975 = vmul.f32 %v974, 0.5
  %v976 = vtanh.pop %v975
  %v977 = vmul.f32 %v976, 0.5
  %v978 = vadd.f32 %v977, 0.5
  %v980 = vrot.slane %v974, 2
  %v982 = vmul.f32 %v980, 0.5
  %v983 = vtanh.pop %v982
  %v984 = vmul.f32 %v983, 0.5
  %v985 = vadd.f32 %v984, 0.5
  %v986 = vrot.slane %v974, 4
  %v988 = vtanh.pop %v986
  %v989 = vrot.slane %v974, 6
  %v991 = vmul.f32 %v989, 0.5
  %v992 = vtanh.pop %v991
  %v993 = vmul.f32 %v992, 0.5
  %v994 = vadd.f32 %v993, 0.5
  %v995 = vmul.f32 %v985, %v669
  %v996 = vmul.f32 %v978, %v988
  %v997 = vadd.f32 %v995, %v996
  %v998 = vtanh.pop %v997
  %v999 = vmul.f32 %v994, %v998
  %s1000 = scalar_lea.vmem %s2, 4
  %1001 = vst [vmem:[%s1000] sm:$0x3] %v999
  %v1002 = vld [vmem:[%s1] sm:$0xff]
  %v1003 = vld [vmem:[%s1 + $0x8] sm:$0xff]
  %v1004 = vld [vmem:[%s1 + $0x10] sm:$0xff]
  %v1005 = vld [vmem:[%s1 + $0x18] sm:$0xff]
  %v1006 = vld [vmem:[%s1 + $0x20] sm:$0xff]
  %v1007 = vld [vmem:[%s1 + $0x28] sm:$0xff]
  %v1008 = vld [vmem:[%s1 + $0x30] sm:$0xff]
  %v1009 = vld [vmem:[%s1 + $0x38] sm:$0xff]
  %v1010 = vld [vmem:[%s1 + $0x40] sm:$0xff]
  %v1011 = vld [vmem:[%s1 + $0x48] sm:$0xff]
  %v1012 = vld [vmem:[%s1 + $0x50] sm:$0xff]
  %v1013 = vld [vmem:[%s1 + $0x58] sm:$0xff]
  %v1014 = vld [vmem:[%s1 + $0x60] sm:$0xff]
  %v1015 = vld [vmem:[%s1 + $0x68] sm:$0xff]
  %v1016 = vld [vmem:[%s1 + $0x70] sm:$0xff]
  %v1017 = vld [vmem:[%s1 + $0x78] sm:$0xff]
  %v1018 = vld [vmem:[%s1 + $0x80] sm:$0xff]
  %v1019 = vld [vmem:[%s1 + $0x88] sm:$0xff]
  %v1020 = vld [vmem:[%s1 + $0x90] sm:$0xff]
  %v1021 = vld [vmem:[%s1 + $0x98] sm:$0xff]
  %v1022 = vld [vmem:[%s1 + $0xa0] sm:$0xff]
  %v1023 = vld [vmem:[%s1 + $0xa8] sm:$0xff]
  %v1024 = vld [vmem:[%s1 + $0xb0] sm:$0xff]
  %v1025 = vld [vmem:[%s1 + $0xb8] sm:$0xff]
  %v1026 = vld [vmem:[%s1 + $0xc0] sm:$0xff]
  %v1027 = vld [vmem:[%s1 + $0xc8] sm:$0xff]
  %v1028 = vld [vmem:[%s1 + $0xd0] sm:$0xff]
  %v1029 = vld [vmem:[%s1 + $0xd8] sm:$0xff]
  %v1030 = vld [vmem:[%s1 + $0xe0] sm:$0xff]
  %v1031 = vld [vmem:[%s1 + $0xe8] sm:$0xff]
  %v1032 = vld [vmem:[%s1 + $0xf0] sm:$0xff]
  %v1033 = vld [vmem:[%s1 + $0xf8] sm:$0xff]
  %v1034 = vpack.c.bf16 %v999, %v999
  %v1067 = vunpack.c.l.b16 %v1002
  %v1068 = vunpack.c.h.b16 %v1002
  %v1069 = vunpack.c.l.b16 %v1003
  %v1070 = vunpack.c.h.b16 %v1003
  %v1071 = vunpack.c.l.b16 %v1004
  %v1072 = vunpack.c.h.b16 %v1004
  %v1073 = vunpack.c.l.b16 %v1005
  %v1074 = vunpack.c.h.b16 %v1005
  %v1075 = vunpack.c.l.b16 %v1006
  %v1076 = vunpack.c.h.b16 %v1006
  %v1077 = vunpack.c.l.b16 %v1007
  %v1078 = vunpack.c.h.b16 %v1007
  %v1079 = vunpack.c.l.b16 %v1008
  %v1080 = vunpack.c.h.b16 %v1008
  %v1081 = vunpack.c.l.b16 %v1009
  %v1082 = vunpack.c.h.b16 %v1009
  %v1083 = vunpack.c.l.b16 %v1010
  %v1084 = vunpack.c.h.b16 %v1010
  %v1085 = vunpack.c.l.b16 %v1011
  %v1086 = vunpack.c.h.b16 %v1011
  %v1087 = vunpack.c.l.b16 %v1012
  %v1088 = vunpack.c.h.b16 %v1012
  %v1089 = vunpack.c.l.b16 %v1013
  %v1090 = vunpack.c.h.b16 %v1013
  %v1091 = vunpack.c.l.b16 %v1014
  %v1092 = vunpack.c.h.b16 %v1014
  %v1093 = vunpack.c.l.b16 %v1015
  %v1094 = vunpack.c.h.b16 %v1015
  %v1095 = vunpack.c.l.b16 %v1016
  %v1096 = vunpack.c.h.b16 %v1016
  %v1097 = vunpack.c.l.b16 %v1017
  %v1098 = vunpack.c.h.b16 %v1017
  %v1099 = vunpack.c.l.b16 %v1018
  %v1100 = vunpack.c.h.b16 %v1018
  %v1101 = vunpack.c.l.b16 %v1019
  %v1102 = vunpack.c.h.b16 %v1019
  %v1103 = vunpack.c.l.b16 %v1020
  %v1104 = vunpack.c.h.b16 %v1020
  %v1105 = vunpack.c.l.b16 %v1021
  %v1106 = vunpack.c.h.b16 %v1021
  %v1107 = vunpack.c.l.b16 %v1022
  %v1108 = vunpack.c.h.b16 %v1022
  %v1109 = vunpack.c.l.b16 %v1023
  %v1110 = vunpack.c.h.b16 %v1023
  %v1111 = vunpack.c.l.b16 %v1024
  %v1112 = vunpack.c.h.b16 %v1024
  %v1113 = vunpack.c.l.b16 %v1025
  %v1114 = vunpack.c.h.b16 %v1025
  %v1115 = vunpack.c.l.b16 %v1026
  %v1116 = vunpack.c.h.b16 %v1026
  %v1117 = vunpack.c.l.b16 %v1027
  %v1118 = vunpack.c.h.b16 %v1027
  %v1119 = vunpack.c.l.b16 %v1028
  %v1120 = vunpack.c.h.b16 %v1028
  %v1121 = vunpack.c.l.b16 %v1029
  %v1122 = vunpack.c.h.b16 %v1029
  %v1123 = vunpack.c.l.b16 %v1030
  %v1124 = vunpack.c.h.b16 %v1030
  %v1125 = vunpack.c.l.b16 %v1031
  %v1126 = vunpack.c.h.b16 %v1031
  %v1127 = vunpack.c.l.b16 %v1032
  %v1128 = vunpack.c.h.b16 %v1032
  %v1129 = vunpack.c.l.b16 %v1033
  %v1130 = vunpack.c.h.b16 %v1033
  %v1131 = vpack.c.b16 %v1071, %v1067
  %v1132 = vpack.c.b16 %v1072, %v1068
  %v1133 = vpack.c.b16 %v1073, %v1069
  %v1134 = vpack.c.b16 %v1074, %v1070
  %v1135 = vpack.c.b16 %v1079, %v1075
  %v1136 = vpack.c.b16 %v1080, %v1076
  %v1137 = vpack.c.b16 %v1081, %v1077
  %v1138 = vpack.c.b16 %v1082, %v1078
  %v1139 = vpack.c.b16 %v1087, %v1083
  %v1140 = vpack.c.b16 %v1088, %v1084
  %v1141 = vpack.c.b16 %v1089, %v1085
  %v1142 = vpack.c.b16 %v1090, %v1086
  %v1143 = vpack.c.b16 %v1095, %v1091
  %v1144 = vpack.c.b16 %v1096, %v1092
  %v1145 = vpack.c.b16 %v1097, %v1093
  %v1146 = vpack.c.b16 %v1098, %v1094
  %v1147 = vpack.c.b16 %v1103, %v1099
  %v1148 = vpack.c.b16 %v1104, %v1100
  %v1149 = vpack.c.b16 %v1105, %v1101
  %v1150 = vpack.c.b16 %v1106, %v1102
  %v1151 = vpack.c.b16 %v1111, %v1107
  %v1152 = vpack.c.b16 %v1112, %v1108
  %v1153 = vpack.c.b16 %v1113, %v1109
  %v1154 = vpack.c.b16 %v1114, %v1110
  %v1155 = vpack.c.b16 %v1119, %v1115
  %v1156 = vpack.c.b16 %v1120, %v1116
  %v1157 = vpack.c.b16 %v1121, %v1117
  %v1158 = vpack.c.b16 %v1122, %v1118
  %v1159 = vpack.c.b16 %v1127, %v1123
  %v1160 = vpack.c.b16 %v1128, %v1124
  %v1161 = vpack.c.b16 %v1129, %v1125
  %v1162 = vpack.c.b16 %v1130, %v1126
  %1195 = vmatprep.subr.bf16.mxu0 %v1132
  %1196 = vmatpush1.bf16.msra.mxu0 %v1131
  %1197 = vmatprep.subr.bf16.mxu0 %v1136
  %1198 = vmatpush1.bf16.msra.mxu0 %v1135
  %1199 = vmatprep.subr.bf16.mxu0 %v1140
  %1200 = vmatpush1.bf16.msra.mxu0 %v1139
  %1201 = vmatprep.subr.bf16.mxu0 %v1144
  %1202 = vmatpush1.bf16.msra.mxu0 %v1143
  %1203 = vmatprep.subr.bf16.mxu0 %v1148
  %1204 = vmatpush1.bf16.msra.mxu0 %v1147
  %1205 = vmatprep.subr.bf16.mxu0 %v1152
  %1206 = vmatpush1.bf16.msra.mxu0 %v1151
  %1207 = vmatprep.subr.bf16.mxu0 %v1156
  %1208 = vmatpush1.bf16.msra.mxu0 %v1155
  %1209 = vmatprep.subr.bf16.mxu0 %v1160
  %1210 = vmatpush1.bf16.msra.mxu0 %v1159
  %1211 = vmatprep.subr.bf16.mxu0 0
  %1212 = vmatpush1.bf16.msra.mxu0 0
  %1213 = vmatprep.subr.bf16.mxu0 0
  %1214 = vmatpush1.bf16.msra.mxu0 0
  %1215 = vmatprep.subr.bf16.mxu0 0
  %1216 = vmatpush1.bf16.msra.mxu0 0
  %1217 = vmatprep.subr.bf16.mxu0 0
  %1218 = vmatpush1.bf16.msra.mxu0 0
  %1219 = vmatprep.subr.bf16.mxu0 0
  %1220 = vmatpush1.bf16.msra.mxu0 0
  %1221 = vmatprep.subr.bf16.mxu0 0
  %1222 = vmatpush1.bf16.msra.mxu0 0
  %1223 = vmatprep.subr.bf16.mxu0 0
  %1224 = vmatpush1.bf16.msra.mxu0 0
  %1225 = vmatprep.subr.bf16.mxu0 0
  %1226 = vmatpush1.bf16.msra.mxu0 0
  %1227 = vmatprep.mubr.bf16.mxu0 0
  %1228 = vmatmul.mubr.bf16.gmra.mrb[0].mxu0 %v1034
  %v1229 = vpop.f32.mrb[0].mxu0
  %v1230 = vadd.f32 0.0, %v1229
  %v1231 = vpop.f32.mrb[0].mxu0
  %v1232 = vadd.f32 0.0, %v1231
  %v1233 = vpop.f32.mrb[0].mxu0
  %v1234 = vpop.f32.mrb[0].mxu0
  %1235 = vdwg.mxu0
  %1236 = vmatprep.subr.bf16.mxu0 %v1134
  %1237 = vmatpush1.bf16.msra.mxu0 %v1133
  %1238 = vmatprep.subr.bf16.mxu0 %v1138
  %1239 = vmatpush1.bf16.msra.mxu0 %v1137
  %1240 = vmatprep.subr.bf16.mxu0 %v1142
  %1241 = vmatpush1.bf16.msra.mxu0 %v1141
  %1242 = vmatprep.subr.bf16.mxu0 %v1146
  %1243 = vmatpush1.bf16.msra.mxu0 %v1145
  %1244 = vmatprep.subr.bf16.mxu0 %v1150
  %1245 = vmatpush1.bf16.msra.mxu0 %v1149
  %1246 = vmatprep.subr.bf16.mxu0 %v1154
  %1247 = vmatpush1.bf16.msra.mxu0 %v1153
  %1248 = vmatprep.subr.bf16.mxu0 %v1158
  %1249 = vmatpush1.bf16.msra.mxu0 %v1157
  %1250 = vmatprep.subr.bf16.mxu0 %v1162
  %1251 = vmatpush1.bf16.msra.mxu0 %v1161
  %1252 = vmatprep.subr.bf16.mxu0 0
  %1253 = vmatpush1.bf16.msra.mxu0 0
  %1254 = vmatprep.subr.bf16.mxu0 0
  %1255 = vmatpush1.bf16.msra.mxu0 0
  %1256 = vmatprep.subr.bf16.mxu0 0
  %1257 = vmatpush1.bf16.msra.mxu0 0
  %1258 = vmatprep.subr.bf16.mxu0 0
  %1259 = vmatpush1.bf16.msra.mxu0 0
  %1260 = vmatprep.subr.bf16.mxu0 0
  %1261 = vmatpush1.bf16.msra.mxu0 0
  %1262 = vmatprep.subr.bf16.mxu0 0
  %1263 = vmatpush1.bf16.msra.mxu0 0
  %1264 = vmatprep.subr.bf16.mxu0 0
  %1265 = vmatpush1.bf16.msra.mxu0 0
  %1266 = vmatprep.subr.bf16.mxu0 0
  %1267 = vmatpush1.bf16.msra.mxu0 0
  %1268 = vmatprep.mubr.bf16.mxu0 0
  %1269 = vmatmul.mubr.bf16.gmra.mrb[0].mxu0 %v1034
  %v1270 = vpop.f32.mrb[0].mxu0
  %v1271 = vadd.f32 0.0, %v1270
  %v1272 = vpop.f32.mrb[0].mxu0
  %v1273 = vadd.f32 0.0, %v1272
  %v1274 = vpop.f32.mrb[0].mxu0
  %v1275 = vpop.f32.mrb[0].mxu0
  %1276 = vdwg.mxu0
  %s1277 = scalar_lea.vmem %s0, 12
  %v1278 = vld [vmem:[%s1277] sm:$0xf]
  %v1279 = vunpack.c.l.bf16 %v1278
  %v1284 = vcombine.low %v1230, %v1232
  %v1285 = vcombine.low %v1271, %v1273
  %v1287 = vunpack.c.l.s4 1983009808
  %v1288 = vunpack.c.0.s8 %v1287
  %v1289 = vlaneseq
  %v1290 = vshrl.u32 %v1289, 7
  %v1291 = vsub.s32 %v1288, %v1290
  %v1292 = vrot.slane %v1284, %v1291
  %v1294 = vunpack.c.l.s4 1983009808
  %v1295 = vunpack.c.0.s8 %v1294
  %v1296 = vlaneseq
  %v1297 = vshrl.u32 %v1296, 7
  %v1298 = vsub.s32 %v1295, %v1297
  %v1299 = vrot.slane %v1285, %v1298
  %v1300 = vcombine.low %v1292, %v1299
  %v1302 = vadd.f32 %v1279, %v1300
  %v1303 = vmul.f32 %v1302, 0.5
  %v1304 = vtanh.pop %v1303
  %v1305 = vmul.f32 %v1304, 0.5
  %v1306 = vadd.f32 %v1305, 0.5
  %v1308 = vrot.slane %v1302, 2
  %v1310 = vmul.f32 %v1308, 0.5
  %v1311 = vtanh.pop %v1310
  %v1312 = vmul.f32 %v1311, 0.5
  %v1313 = vadd.f32 %v1312, 0.5
  %v1314 = vrot.slane %v1302, 4
  %v1316 = vtanh.pop %v1314
  %v1317 = vrot.slane %v1302, 6
  %v1319 = vmul.f32 %v1317, 0.5
  %v1320 = vtanh.pop %v1319
  %v1321 = vmul.f32 %v1320, 0.5
  %v1322 = vadd.f32 %v1321, 0.5
  %v1323 = vmul.f32 %v1313, %v997
  %v1324 = vmul.f32 %v1306, %v1316
  %v1325 = vadd.f32 %v1323, %v1324
  %v1326 = vtanh.pop %v1325
  %v1327 = vmul.f32 %v1322, %v1326
  %s1328 = scalar_lea.vmem %s2, 6
  %1329 = vst [vmem:[%s1328] sm:$0x3] %v1327
  %v1330 = vld [vmem:[%s1] sm:$0xff]
  %v1331 = vld [vmem:[%s1 + $0x8] sm:$0xff]
  %v1332 = vld [vmem:[%s1 + $0x10] sm:$0xff]
  %v1333 = vld [vmem:[%s1 + $0x18] sm:$0xff]
  %v1334 = vld [vmem:[%s1 + $0x20] sm:$0xff]
  %v1335 = vld [vmem:[%s1 + $0x28] sm:$0xff]
  %v1336 = vld [vmem:[%s1 + $0x30] sm:$0xff]
  %v1337 = vld [vmem:[%s1 + $0x38] sm:$0xff]
  %v1338 = vld [vmem:[%s1 + $0x40] sm:$0xff]
  %v1339 = vld [vmem:[%s1 + $0x48] sm:$0xff]
  %v1340 = vld [vmem:[%s1 + $0x50] sm:$0xff]
  %v1341 = vld [vmem:[%s1 + $0x58] sm:$0xff]
  %v1342 = vld [vmem:[%s1 + $0x60] sm:$0xff]
  %v1343 = vld [vmem:[%s1 + $0x68] sm:$0xff]
  %v1344 = vld [vmem:[%s1 + $0x70] sm:$0xff]
  %v1345 = vld [vmem:[%s1 + $0x78] sm:$0xff]
  %v1346 = vld [vmem:[%s1 + $0x80] sm:$0xff]
  %v1347 = vld [vmem:[%s1 + $0x88] sm:$0xff]
  %v1348 = vld [vmem:[%s1 + $0x90] sm:$0xff]
  %v1349 = vld [vmem:[%s1 + $0x98] sm:$0xff]
  %v1350 = vld [vmem:[%s1 + $0xa0] sm:$0xff]
  %v1351 = vld [vmem:[%s1 + $0xa8] sm:$0xff]
  %v1352 = vld [vmem:[%s1 + $0xb0] sm:$0xff]
  %v1353 = vld [vmem:[%s1 + $0xb8] sm:$0xff]
  %v1354 = vld [vmem:[%s1 + $0xc0] sm:$0xff]
  %v1355 = vld [vmem:[%s1 + $0xc8] sm:$0xff]
  %v1356 = vld [vmem:[%s1 + $0xd0] sm:$0xff]
  %v1357 = vld [vmem:[%s1 + $0xd8] sm:$0xff]
  %v1358 = vld [vmem:[%s1 + $0xe0] sm:$0xff]
  %v1359 = vld [vmem:[%s1 + $0xe8] sm:$0xff]
  %v1360 = vld [vmem:[%s1 + $0xf0] sm:$0xff]
  %v1361 = vld [vmem:[%s1 + $0xf8] sm:$0xff]
  %v1362 = vpack.c.bf16 %v1327, %v1327
  %v1395 = vunpack.c.l.b16 %v1330
  %v1396 = vunpack.c.h.b16 %v1330
  %v1397 = vunpack.c.l.b16 %v1331
  %v1398 = vunpack.c.h.b16 %v1331
  %v1399 = vunpack.c.l.b16 %v1332
  %v1400 = vunpack.c.h.b16 %v1332
  %v1401 = vunpack.c.l.b16 %v1333
  %v1402 = vunpack.c.h.b16 %v1333
  %v1403 = vunpack.c.l.b16 %v1334
  %v1404 = vunpack.c.h.b16 %v1334
  %v1405 = vunpack.c.l.b16 %v1335
  %v1406 = vunpack.c.h.b16 %v1335
  %v1407 = vunpack.c.l.b16 %v1336
  %v1408 = vunpack.c.h.b16 %v1336
  %v1409 = vunpack.c.l.b16 %v1337
  %v1410 = vunpack.c.h.b16 %v1337
  %v1411 = vunpack.c.l.b16 %v1338
  %v1412 = vunpack.c.h.b16 %v1338
  %v1413 = vunpack.c.l.b16 %v1339
  %v1414 = vunpack.c.h.b16 %v1339
  %v1415 = vunpack.c.l.b16 %v1340
  %v1416 = vunpack.c.h.b16 %v1340
  %v1417 = vunpack.c.l.b16 %v1341
  %v1418 = vunpack.c.h.b16 %v1341
  %v1419 = vunpack.c.l.b16 %v1342
  %v1420 = vunpack.c.h.b16 %v1342
  %v1421 = vunpack.c.l.b16 %v1343
  %v1422 = vunpack.c.h.b16 %v1343
  %v1423 = vunpack.c.l.b16 %v1344
  %v1424 = vunpack.c.h.b16 %v1344
  %v1425 = vunpack.c.l.b16 %v1345
  %v1426 = vunpack.c.h.b16 %v1345
  %v1427 = vunpack.c.l.b16 %v1346
  %v1428 = vunpack.c.h.b16 %v1346
  %v1429 = vunpack.c.l.b16 %v1347
  %v1430 = vunpack.c.h.b16 %v1347
  %v1431 = vunpack.c.l.b16 %v1348
  %v1432 = vunpack.c.h.b16 %v1348
  %v1433 = vunpack.c.l.b16 %v1349
  %v1434 = vunpack.c.h.b16 %v1349
  %v1435 = vunpack.c.l.b16 %v1350
  %v1436 = vunpack.c.h.b16 %v1350
  %v1437 = vunpack.c.l.b16 %v1351
  %v1438 = vunpack.c.h.b16 %v1351
  %v1439 = vunpack.c.l.b16 %v1352
  %v1440 = vunpack.c.h.b16 %v1352
  %v1441 = vunpack.c.l.b16 %v1353
  %v1442 = vunpack.c.h.b16 %v1353
  %v1443 = vunpack.c.l.b16 %v1354
  %v1444 = vunpack.c.h.b16 %v1354
  %v1445 = vunpack.c.l.b16 %v1355
  %v1446 = vunpack.c.h.b16 %v1355
  %v1447 = vunpack.c.l.b16 %v1356
  %v1448 = vunpack.c.h.b16 %v1356
  %v1449 = vunpack.c.l.b16 %v1357
  %v1450 = vunpack.c.h.b16 %v1357
  %v1451 = vunpack.c.l.b16 %v1358
  %v1452 = vunpack.c.h.b16 %v1358
  %v1453 = vunpack.c.l.b16 %v1359
  %v1454 = vunpack.c.h.b16 %v1359
  %v1455 = vunpack.c.l.b16 %v1360
  %v1456 = vunpack.c.h.b16 %v1360
  %v1457 = vunpack.c.l.b16 %v1361
  %v1458 = vunpack.c.h.b16 %v1361
  %v1459 = vpack.c.b16 %v1399, %v1395
  %v1460 = vpack.c.b16 %v1400, %v1396
  %v1461 = vpack.c.b16 %v1401, %v1397
  %v1462 = vpack.c.b16 %v1402, %v1398
  %v1463 = vpack.c.b16 %v1407, %v1403
  %v1464 = vpack.c.b16 %v1408, %v1404
  %v1465 = vpack.c.b16 %v1409, %v1405
  %v1466 = vpack.c.b16 %v1410, %v1406
  %v1467 = vpack.c.b16 %v1415, %v1411
  %v1468 = vpack.c.b16 %v1416, %v1412
  %v1469 = vpack.c.b16 %v1417, %v1413
  %v1470 = vpack.c.b16 %v1418, %v1414
  %v1471 = vpack.c.b16 %v1423, %v1419
  %v1472 = vpack.c.b16 %v1424, %v1420
  %v1473 = vpack.c.b16 %v1425, %v1421
  %v1474 = vpack.c.b16 %v1426, %v1422
  %v1475 = vpack.c.b16 %v1431, %v1427
  %v1476 = vpack.c.b16 %v1432, %v1428
  %v1477 = vpack.c.b16 %v1433, %v1429
  %v1478 = vpack.c.b16 %v1434, %v1430
  %v1479 = vpack.c.b16 %v1439, %v1435
  %v1480 = vpack.c.b16 %v1440, %v1436
  %v1481 = vpack.c.b16 %v1441, %v1437
  %v1482 = vpack.c.b16 %v1442, %v1438
  %v1483 = vpack.c.b16 %v1447, %v1443
  %v1484 = vpack.c.b16 %v1448, %v1444
  %v1485 = vpack.c.b16 %v1449, %v1445
  %v1486 = vpack.c.b16 %v1450, %v1446
  %v1487 = vpack.c.b16 %v1455, %v1451
  %v1488 = vpack.c.b16 %v1456, %v1452
  %v1489 = vpack.c.b16 %v1457, %v1453
  %v1490 = vpack.c.b16 %v1458, %v1454
  %1523 = vmatprep.subr.bf16.mxu0 %v1460
  %1524 = vmatpush1.bf16.msra.mxu0 %v1459
  %1525 = vmatprep.subr.bf16.mxu0 %v1464
  %1526 = vmatpush1.bf16.msra.mxu0 %v1463
  %1527 = vmatprep.subr.bf16.mxu0 %v1468
  %1528 = vmatpush1.bf16.msra.mxu0 %v1467
  %1529 = vmatprep.subr.bf16.mxu0 %v1472
  %1530 = vmatpush1.bf16.msra.mxu0 %v1471
  %1531 = vmatprep.subr.bf16.mxu0 %v1476
  %1532 = vmatpush1.bf16.msra.mxu0 %v1475
  %1533 = vmatprep.subr.bf16.mxu0 %v1480
  %1534 = vmatpush1.bf16.msra.mxu0 %v1479
  %1535 = vmatprep.subr.bf16.mxu0 %v1484
  %1536 = vmatpush1.bf16.msra.mxu0 %v1483
  %1537 = vmatprep.subr.bf16.mxu0 %v1488
  %1538 = vmatpush1.bf16.msra.mxu0 %v1487
  %1539 = vmatprep.subr.bf16.mxu0 0
  %1540 = vmatpush1.bf16.msra.mxu0 0
  %1541 = vmatprep.subr.bf16.mxu0 0
  %1542 = vmatpush1.bf16.msra.mxu0 0
  %1543 = vmatprep.subr.bf16.mxu0 0
  %1544 = vmatpush1.bf16.msra.mxu0 0
  %1545 = vmatprep.subr.bf16.mxu0 0
  %1546 = vmatpush1.bf16.msra.mxu0 0
  %1547 = vmatprep.subr.bf16.mxu0 0
  %1548 = vmatpush1.bf16.msra.mxu0 0
  %1549 = vmatprep.subr.bf16.mxu0 0
  %1550 = vmatpush1.bf16.msra.mxu0 0
  %1551 = vmatprep.subr.bf16.mxu0 0
  %1552 = vmatpush1.bf16.msra.mxu0 0
  %1553 = vmatprep.subr.bf16.mxu0 0
  %1554 = vmatpush1.bf16.msra.mxu0 0
  %1555 = vmatprep.mubr.bf16.mxu0 0
  %1556 = vmatmul.mubr.bf16.gmra.mrb[0].mxu0 %v1362
  %v1557 = vpop.f32.mrb[0].mxu0
  %v1558 = vadd.f32 0.0, %v1557
  %v1559 = vpop.f32.mrb[0].mxu0
  %v1560 = vadd.f32 0.0, %v1559
  %v1561 = vpop.f32.mrb[0].mxu0
  %v1562 = vpop.f32.mrb[0].mxu0
  %1563 = vdwg.mxu0
  %1564 = vmatprep.subr.bf16.mxu0 %v1462
  %1565 = vmatpush1.bf16.msra.mxu0 %v1461
  %1566 = vmatprep.subr.bf16.mxu0 %v1466
  %1567 = vmatpush1.bf16.msra.mxu0 %v1465
  %1568 = vmatprep.subr.bf16.mxu0 %v1470
  %1569 = vmatpush1.bf16.msra.mxu0 %v1469
  %1570 = vmatprep.subr.bf16.mxu0 %v1474
  %1571 = vmatpush1.bf16.msra.mxu0 %v1473
  %1572 = vmatprep.subr.bf16.mxu0 %v1478
  %1573 = vmatpush1.bf16.msra.mxu0 %v1477
  %1574 = vmatprep.subr.bf16.mxu0 %v1482
  %1575 = vmatpush1.bf16.msra.mxu0 %v1481
  %1576 = vmatprep.subr.bf16.mxu0 %v1486
  %1577 = vmatpush1.bf16.msra.mxu0 %v1485
  %1578 = vmatprep.subr.bf16.mxu0 %v1490
  %1579 = vmatpush1.bf16.msra.mxu0 %v1489
  %1580 = vmatprep.subr.bf16.mxu0 0
  %1581 = vmatpush1.bf16.msra.mxu0 0
  %1582 = vmatprep.subr.bf16.mxu0 0
  %1583 = vmatpush1.bf16.msra.mxu0 0
  %1584 = vmatprep.subr.bf16.mxu0 0
  %1585 = vmatpush1.bf16.msra.mxu0 0
  %1586 = vmatprep.subr.bf16.mxu0 0
  %1587 = vmatpush1.bf16.msra.mxu0 0
  %1588 = vmatprep.subr.bf16.mxu0 0
  %1589 = vmatpush1.bf16.msra.mxu0 0
  %1590 = vmatprep.subr.bf16.mxu0 0
  %1591 = vmatpush1.bf16.msra.mxu0 0
  %1592 = vmatprep.subr.bf16.mxu0 0
  %1593 = vmatpush1.bf16.msra.mxu0 0
  %1594 = vmatprep.subr.bf16.mxu0 0
  %1595 = vmatpush1.bf16.msra.mxu0 0
  %1596 = vmatprep.mubr.bf16.mxu0 0
  %1597 = vmatmul.mubr.bf16.gmra.mrb[0].mxu0 %v1362
  %v1598 = vpop.f32.mrb[0].mxu0
  %v1599 = vadd.f32 0.0, %v1598
  %v1600 = vpop.f32.mrb[0].mxu0
  %v1601 = vadd.f32 0.0, %v1600
  %v1602 = vpop.f32.mrb[0].mxu0
  %v1603 = vpop.f32.mrb[0].mxu0
  %1604 = vdwg.mxu0
  %s1605 = scalar_lea.vmem %s0, 16
  %v1606 = vld [vmem:[%s1605] sm:$0xf]
  %v1607 = vunpack.c.l.bf16 %v1606
  %v1612 = vcombine.low %v1558, %v1560
  %v1613 = vcombine.low %v1599, %v1601
  %v1615 = vunpack.c.l.s4 1983009808
  %v1616 = vunpack.c.0.s8 %v1615
  %v1617 = vlaneseq
  %v1618 = vshrl.u32 %v1617, 7
  %v1619 = vsub.s32 %v1616, %v1618
  %v1620 = vrot.slane %v1612, %v1619
  %v1622 = vunpack.c.l.s4 1983009808
  %v1623 = vunpack.c.0.s8 %v1622
  %v1624 = vlaneseq
  %v1625 = vshrl.u32 %v1624, 7
  %v1626 = vsub.s32 %v1623, %v1625
  %v1627 = vrot.slane %v1613, %v1626
  %v1628 = vcombine.low %v1620, %v1627
  %v1630 = vadd.f32 %v1607, %v1628
  %v1631 = vmul.f32 %v1630, 0.5
  %v1632 = vtanh.pop %v1631
  %v1633 = vmul.f32 %v1632, 0.5
  %v1634 = vadd.f32 %v1633, 0.5
  %v1636 = vrot.slane %v1630, 2
  %v1638 = vmul.f32 %v1636, 0.5
  %v1639 = vtanh.pop %v1638
  %v1640 = vmul.f32 %v1639, 0.5
  %v1641 = vadd.f32 %v1640, 0.5
  %v1642 = vrot.slane %v1630, 4
  %v1644 = vtanh.pop %v1642
  %v1645 = vrot.slane %v1630, 6
  %v1647 = vmul.f32 %v1645, 0.5
  %v1648 = vtanh.pop %v1647
  %v1649 = vmul.f32 %v1648, 0.5
  %v1650 = vadd.f32 %v1649, 0.5
  %v1651 = vmul.f32 %v1641, %v1325
  %v1652 = vmul.f32 %v1634, %v1644
  %v1653 = vadd.f32 %v1651, %v1652
  %v1654 = vtanh.pop %v1653
  %v1655 = vmul.f32 %v1650, %v1654
  %s1656 = scalar_lea.vmem %s2, 8
  %1657 = vst [vmem:[%s1656] sm:$0x3] %v1655
  %v1658 = vld [vmem:[%s1] sm:$0xff]
  %v1659 = vld [vmem:[%s1 + $0x8] sm:$0xff]
  %v1660 = vld [vmem:[%s1 + $0x10] sm:$0xff]
  %v1661 = vld [vmem:[%s1 + $0x18] sm:$0xff]
  %v1662 = vld [vmem:[%s1 + $0x20] sm:$0xff]
  %v1663 = vld [vmem:[%s1 + $0x28] sm:$0xff]
  %v1664 = vld [vmem:[%s1 + $0x30] sm:$0xff]
  %v1665 = vld [vmem:[%s1 + $0x38] sm:$0xff]
  %v1666 = vld [vmem:[%s1 + $0x40] sm:$0xff]
  %v1667 = vld [vmem:[%s1 + $0x48] sm:$0xff]
  %v1668 = vld [vmem:[%s1 + $0x50] sm:$0xff]
  %v1669 = vld [vmem:[%s1 + $0x58] sm:$0xff]
  %v1670 = vld [vmem:[%s1 + $0x60] sm:$0xff]
  %v1671 = vld [vmem:[%s1 + $0x68] sm:$0xff]
  %v1672 = vld [vmem:[%s1 + $0x70] sm:$0xff]
  %v1673 = vld [vmem:[%s1 + $0x78] sm:$0xff]
  %v1674 = vld [vmem:[%s1 + $0x80] sm:$0xff]
  %v1675 = vld [vmem:[%s1 + $0x88] sm:$0xff]
  %v1676 = vld [vmem:[%s1 + $0x90] sm:$0xff]
  %v1677 = vld [vmem:[%s1 + $0x98] sm:$0xff]
  %v1678 = vld [vmem:[%s1 + $0xa0] sm:$0xff]
  %v1679 = vld [vmem:[%s1 + $0xa8] sm:$0xff]
  %v1680 = vld [vmem:[%s1 + $0xb0] sm:$0xff]
  %v1681 = vld [vmem:[%s1 + $0xb8] sm:$0xff]
  %v1682 = vld [vmem:[%s1 + $0xc0] sm:$0xff]
  %v1683 = vld [vmem:[%s1 + $0xc8] sm:$0xff]
  %v1684 = vld [vmem:[%s1 + $0xd0] sm:$0xff]
  %v1685 = vld [vmem:[%s1 + $0xd8] sm:$0xff]
  %v1686 = vld [vmem:[%s1 + $0xe0] sm:$0xff]
  %v1687 = vld [vmem:[%s1 + $0xe8] sm:$0xff]
  %v1688 = vld [vmem:[%s1 + $0xf0] sm:$0xff]
  %v1689 = vld [vmem:[%s1 + $0xf8] sm:$0xff]
  %v1690 = vpack.c.bf16 %v1655, %v1655
  %v1723 = vunpack.c.l.b16 %v1658
  %v1724 = vunpack.c.h.b16 %v1658
  %v1725 = vunpack.c.l.b16 %v1659
  %v1726 = vunpack.c.h.b16 %v1659
  %v1727 = vunpack.c.l.b16 %v1660
  %v1728 = vunpack.c.h.b16 %v1660
  %v1729 = vunpack.c.l.b16 %v1661
  %v1730 = vunpack.c.h.b16 %v1661
  %v1731 = vunpack.c.l.b16 %v1662
  %v1732 = vunpack.c.h.b16 %v1662
  %v1733 = vunpack.c.l.b16 %v1663
  %v1734 = vunpack.c.h.b16 %v1663
  %v1735 = vunpack.c.l.b16 %v1664
  %v1736 = vunpack.c.h.b16 %v1664
  %v1737 = vunpack.c.l.b16 %v1665
  %v1738 = vunpack.c.h.b16 %v1665
  %v1739 = vunpack.c.l.b16 %v1666
  %v1740 = vunpack.c.h.b16 %v1666
  %v1741 = vunpack.c.l.b16 %v1667
  %v1742 = vunpack.c.h.b16 %v1667
  %v1743 = vunpack.c.l.b16 %v1668
  %v1744 = vunpack.c.h.b16 %v1668
  %v1745 = vunpack.c.l.b16 %v1669
  %v1746 = vunpack.c.h.b16 %v1669
  %v1747 = vunpack.c.l.b16 %v1670
  %v1748 = vunpack.c.h.b16 %v1670
  %v1749 = vunpack.c.l.b16 %v1671
  %v1750 = vunpack.c.h.b16 %v1671
  %v1751 = vunpack.c.l.b16 %v1672
  %v1752 = vunpack.c.h.b16 %v1672
  %v1753 = vunpack.c.l.b16 %v1673
  %v1754 = vunpack.c.h.b16 %v1673
  %v1755 = vunpack.c.l.b16 %v1674
  %v1756 = vunpack.c.h.b16 %v1674
  %v1757 = vunpack.c.l.b16 %v1675
  %v1758 = vunpack.c.h.b16 %v1675
  %v1759 = vunpack.c.l.b16 %v1676
  %v1760 = vunpack.c.h.b16 %v1676
  %v1761 = vunpack.c.l.b16 %v1677
  %v1762 = vunpack.c.h.b16 %v1677
  %v1763 = vunpack.c.l.b16 %v1678
  %v1764 = vunpack.c.h.b16 %v1678
  %v1765 = vunpack.c.l.b16 %v1679
  %v1766 = vunpack.c.h.b16 %v1679
  %v1767 = vunpack.c.l.b16 %v1680
  %v1768 = vunpack.c.h.b16 %v1680
  %v1769 = vunpack.c.l.b16 %v1681
  %v1770 = vunpack.c.h.b16 %v1681
  %v1771 = vunpack.c.l.b16 %v1682
  %v1772 = vunpack.c.h.b16 %v1682
  %v1773 = vunpack.c.l.b16 %v1683
  %v1774 = vunpack.c.h.b16 %v1683
  %v1775 = vunpack.c.l.b16 %v1684
  %v1776 = vunpack.c.h.b16 %v1684
  %v1777 = vunpack.c.l.b16 %v1685
  %v1778 = vunpack.c.h.b16 %v1685
  %v1779 = vunpack.c.l.b16 %v1686
  %v1780 = vunpack.c.h.b16 %v1686
  %v1781 = vunpack.c.l.b16 %v1687
  %v1782 = vunpack.c.h.b16 %v1687
  %v1783 = vunpack.c.l.b16 %v1688
  %v1784 = vunpack.c.h.b16 %v1688
  %v1785 = vunpack.c.l.b16 %v1689
  %v1786 = vunpack.c.h.b16 %v1689
  %v1787 = vpack.c.b16 %v1727, %v1723
  %v1788 = vpack.c.b16 %v1728, %v1724
  %v1789 = vpack.c.b16 %v1729, %v1725
  %v1790 = vpack.c.b16 %v1730, %v1726
  %v1791 = vpack.c.b16 %v1735, %v1731
  %v1792 = vpack.c.b16 %v1736, %v1732
  %v1793 = vpack.c.b16 %v1737, %v1733
  %v1794 = vpack.c.b16 %v1738, %v1734
  %v1795 = vpack.c.b16 %v1743, %v1739
  %v1796 = vpack.c.b16 %v1744, %v1740
  %v1797 = vpack.c.b16 %v1745, %v1741
  %v1798 = vpack.c.b16 %v1746, %v1742
  %v1799 = vpack.c.b16 %v1751, %v1747
  %v1800 = vpack.c.b16 %v1752, %v1748
  %v1801 = vpack.c.b16 %v1753, %v1749
  %v1802 = vpack.c.b16 %v1754, %v1750
  %v1803 = vpack.c.b16 %v1759, %v1755
  %v1804 = vpack.c.b16 %v1760, %v1756
  %v1805 = vpack.c.b16 %v1761, %v1757
  %v1806 = vpack.c.b16 %v1762, %v1758
  %v1807 = vpack.c.b16 %v1767, %v1763
  %v1808 = vpack.c.b16 %v1768, %v1764
  %v1809 = vpack.c.b16 %v1769, %v1765
  %v1810 = vpack.c.b16 %v1770, %v1766
  %v1811 = vpack.c.b16 %v1775, %v1771
  %v1812 = vpack.c.b16 %v1776, %v1772
  %v1813 = vpack.c.b16 %v1777, %v1773
  %v1814 = vpack.c.b16 %v1778, %v1774
  %v1815 = vpack.c.b16 %v1783, %v1779
  %v1816 = vpack.c.b16 %v1784, %v1780
  %v1817 = vpack.c.b16 %v1785, %v1781
  %v1818 = vpack.c.b16 %v1786, %v1782
  %1851 = vmatprep.subr.bf16.mxu0 %v1788
  %1852 = vmatpush1.bf16.msra.mxu0 %v1787
  %1853 = vmatprep.subr.bf16.mxu0 %v1792
  %1854 = vmatpush1.bf16.msra.mxu0 %v1791
  %1855 = vmatprep.subr.bf16.mxu0 %v1796
  %1856 = vmatpush1.bf16.msra.mxu0 %v1795
  %1857 = vmatprep.subr.bf16.mxu0 %v1800
  %1858 = vmatpush1.bf16.msra.mxu0 %v1799
  %1859 = vmatprep.subr.bf16.mxu0 %v1804
  %1860 = vmatpush1.bf16.msra.mxu0 %v1803
  %1861 = vmatprep.subr.bf16.mxu0 %v1808
  %1862 = vmatpush1.bf16.msra.mxu0 %v1807
  %1863 = vmatprep.subr.bf16.mxu0 %v1812
  %1864 = vmatpush1.bf16.msra.mxu0 %v1811
  %1865 = vmatprep.subr.bf16.mxu0 %v1816
  %1866 = vmatpush1.bf16.msra.mxu0 %v1815
  %1867 = vmatprep.subr.bf16.mxu0 0
  %1868 = vmatpush1.bf16.msra.mxu0 0
  %1869 = vmatprep.subr.bf16.mxu0 0
  %1870 = vmatpush1.bf16.msra.mxu0 0
  %1871 = vmatprep.subr.bf16.mxu0 0
  %1872 = vmatpush1.bf16.msra.mxu0 0
  %1873 = vmatprep.subr.bf16.mxu0 0
  %1874 = vmatpush1.bf16.msra.mxu0 0
  %1875 = vmatprep.subr.bf16.mxu0 0
  %1876 = vmatpush1.bf16.msra.mxu0 0
  %1877 = vmatprep.subr.bf16.mxu0 0
  %1878 = vmatpush1.bf16.msra.mxu0 0
  %1879 = vmatprep.subr.bf16.mxu0 0
  %1880 = vmatpush1.bf16.msra.mxu0 0
  %1881 = vmatprep.subr.bf16.mxu0 0
  %1882 = vmatpush1.bf16.msra.mxu0 0
  %1883 = vmatprep.mubr.bf16.mxu0 0
  %1884 = vmatmul.mubr.bf16.gmra.mrb[0].mxu0 %v1690
  %v1885 = vpop.f32.mrb[0].mxu0
  %v1886 = vadd.f32 0.0, %v1885
  %v1887 = vpop.f32.mrb[0].mxu0
  %v1888 = vadd.f32 0.0, %v1887
  %v1889 = vpop.f32.mrb[0].mxu0
  %v1890 = vpop.f32.mrb[0].mxu0
  %1891 = vdwg.mxu0
  %1892 = vmatprep.subr.bf16.mxu0 %v1790
  %1893 = vmatpush1.bf16.msra.mxu0 %v1789
  %1894 = vmatprep.subr.bf16.mxu0 %v1794
  %1895 = vmatpush1.bf16.msra.mxu0 %v1793
  %1896 = vmatprep.subr.bf16.mxu0 %v1798
  %1897 = vmatpush1.bf16.msra.mxu0 %v1797
  %1898 = vmatprep.subr.bf16.mxu0 %v1802
  %1899 = vmatpush1.bf16.msra.mxu0 %v1801
  %1900 = vmatprep.subr.bf16.mxu0 %v1806
  %1901 = vmatpush1.bf16.msra.mxu0 %v1805
  %1902 = vmatprep.subr.bf16.mxu0 %v1810
  %1903 = vmatpush1.bf16.msra.mxu0 %v1809
  %1904 = vmatprep.subr.bf16.mxu0 %v1814
  %1905 = vmatpush1.bf16.msra.mxu0 %v1813
  %1906 = vmatprep.subr.bf16.mxu0 %v1818
  %1907 = vmatpush1.bf16.msra.mxu0 %v1817
  %1908 = vmatprep.subr.bf16.mxu0 0
  %1909 = vmatpush1.bf16.msra.mxu0 0
  %1910 = vmatprep.subr.bf16.mxu0 0
  %1911 = vmatpush1.bf16.msra.mxu0 0
  %1912 = vmatprep.subr.bf16.mxu0 0
  %1913 = vmatpush1.bf16.msra.mxu0 0
  %1914 = vmatprep.subr.bf16.mxu0 0
  %1915 = vmatpush1.bf16.msra.mxu0 0
  %1916 = vmatprep.subr.bf16.mxu0 0
  %1917 = vmatpush1.bf16.msra.mxu0 0
  %1918 = vmatprep.subr.bf16.mxu0 0
  %1919 = vmatpush1.bf16.msra.mxu0 0
  %1920 = vmatprep.subr.bf16.mxu0 0
  %1921 = vmatpush1.bf16.msra.mxu0 0
  %1922 = vmatprep.subr.bf16.mxu0 0
  %1923 = vmatpush1.bf16.msra.mxu0 0
  %1924 = vmatprep.mubr.bf16.mxu0 0
  %1925 = vmatmul.mubr.bf16.gmra.mrb[0].mxu0 %v1690
  %v1926 = vpop.f32.mrb[0].mxu0
  %v1927 = vadd.f32 0.0, %v1926
  %v1928 = vpop.f32.mrb[0].mxu0
  %v1929 = vadd.f32 0.0, %v1928
  %v1930 = vpop.f32.mrb[0].mxu0
  %v1931 = vpop.f32.mrb[0].mxu0
  %1932 = vdwg.mxu0
  %s1933 = scalar_lea.vmem %s0, 20
  %v1934 = vld [vmem:[%s1933] sm:$0xf]
  %v1935 = vunpack.c.l.bf16 %v1934
  %v1940 = vcombine.low %v1886, %v1888
  %v1941 = vcombine.low %v1927, %v1929
  %v1943 = vunpack.c.l.s4 1983009808
  %v1944 = vunpack.c.0.s8 %v1943
  %v1945 = vlaneseq
  %v1946 = vshrl.u32 %v1945, 7
  %v1947 = vsub.s32 %v1944, %v1946
  %v1948 = vrot.slane %v1940, %v1947
  %v1950 = vunpack.c.l.s4 1983009808
  %v1951 = vunpack.c.0.s8 %v1950
  %v1952 = vlaneseq
  %v1953 = vshrl.u32 %v1952, 7
  %v1954 = vsub.s32 %v1951, %v1953
  %v1955 = vrot.slane %v1941, %v1954
  %v1956 = vcombine.low %v1948, %v1955
  %v1958 = vadd.f32 %v1935, %v1956
  %v1959 = vmul.f32 %v1958, 0.5
  %v1960 = vtanh.pop %v1959
  %v1961 = vmul.f32 %v1960, 0.5
  %v1962 = vadd.f32 %v1961, 0.5
  %v1964 = vrot.slane %v1958, 2
  %v1966 = vmul.f32 %v1964, 0.5
  %v1967 = vtanh.pop %v1966
  %v1968 = vmul.f32 %v1967, 0.5
  %v1969 = vadd.f32 %v1968, 0.5
  %v1970 = vrot.slane %v1958, 4
  %v1972 = vtanh.pop %v1970
  %v1973 = vrot.slane %v1958, 6
  %v1975 = vmul.f32 %v1973, 0.5
  %v1976 = vtanh.pop %v1975
  %v1977 = vmul.f32 %v1976, 0.5
  %v1978 = vadd.f32 %v1977, 0.5
  %v1979 = vmul.f32 %v1969, %v1653
  %v1980 = vmul.f32 %v1962, %v1972
  %v1981 = vadd.f32 %v1979, %v1980
  %v1982 = vtanh.pop %v1981
  %v1983 = vmul.f32 %v1978, %v1982
  %s1984 = scalar_lea.vmem %s2, 10
  %1985 = vst [vmem:[%s1984] sm:$0x3] %v1983
  %v1986 = vld [vmem:[%s1] sm:$0xff]
  %v1987 = vld [vmem:[%s1 + $0x8] sm:$0xff]
  %v1988 = vld [vmem:[%s1 + $0x10] sm:$0xff]
  %v1989 = vld [vmem:[%s1 + $0x18] sm:$0xff]
  %v1990 = vld [vmem:[%s1 + $0x20] sm:$0xff]
  %v1991 = vld [vmem:[%s1 + $0x28] sm:$0xff]
  %v1992 = vld [vmem:[%s1 + $0x30] sm:$0xff]
  %v1993 = vld [vmem:[%s1 + $0x38] sm:$0xff]
  %v1994 = vld [vmem:[%s1 + $0x40] sm:$0xff]
  %v1995 = vld [vmem:[%s1 + $0x48] sm:$0xff]
  %v1996 = vld [vmem:[%s1 + $0x50] sm:$0xff]
  %v1997 = vld [vmem:[%s1 + $0x58] sm:$0xff]
  %v1998 = vld [vmem:[%s1 + $0x60] sm:$0xff]
  %v1999 = vld [vmem:[%s1 + $0x68] sm:$0xff]
  %v2000 = vld [vmem:[%s1 + $0x70] sm:$0xff]
  %v2001 = vld [vmem:[%s1 + $0x78] sm:$0xff]
  %v2002 = vld [vmem:[%s1 + $0x80] sm:$0xff]
  %v2003 = vld [vmem:[%s1 + $0x88] sm:$0xff]
  %v2004 = vld [vmem:[%s1 + $0x90] sm:$0xff]
  %v2005 = vld [vmem:[%s1 + $0x98] sm:$0xff]
  %v2006 = vld [vmem:[%s1 + $0xa0] sm:$0xff]
  %v2007 = vld [vmem:[%s1 + $0xa8] sm:$0xff]
  %v2008 = vld [vmem:[%s1 + $0xb0] sm:$0xff]
  %v2009 = vld [vmem:[%s1 + $0xb8] sm:$0xff]
  %v2010 = vld [vmem:[%s1 + $0xc0] sm:$0xff]
  %v2011 = vld [vmem:[%s1 + $0xc8] sm:$0xff]
  %v2012 = vld [vmem:[%s1 + $0xd0] sm:$0xff]
  %v2013 = vld [vmem:[%s1 + $0xd8] sm:$0xff]
  %v2014 = vld [vmem:[%s1 + $0xe0] sm:$0xff]
  %v2015 = vld [vmem:[%s1 + $0xe8] sm:$0xff]
  %v2016 = vld [vmem:[%s1 + $0xf0] sm:$0xff]
  %v2017 = vld [vmem:[%s1 + $0xf8] sm:$0xff]
  %v2018 = vpack.c.bf16 %v1983, %v1983
  %v2051 = vunpack.c.l.b16 %v1986
  %v2052 = vunpack.c.h.b16 %v1986
  %v2053 = vunpack.c.l.b16 %v1987
  %v2054 = vunpack.c.h.b16 %v1987
  %v2055 = vunpack.c.l.b16 %v1988
  %v2056 = vunpack.c.h.b16 %v1988
  %v2057 = vunpack.c.l.b16 %v1989
  %v2058 = vunpack.c.h.b16 %v1989
  %v2059 = vunpack.c.l.b16 %v1990
  %v2060 = vunpack.c.h.b16 %v1990
  %v2061 = vunpack.c.l.b16 %v1991
  %v2062 = vunpack.c.h.b16 %v1991
  %v2063 = vunpack.c.l.b16 %v1992
  %v2064 = vunpack.c.h.b16 %v1992
  %v2065 = vunpack.c.l.b16 %v1993
  %v2066 = vunpack.c.h.b16 %v1993
  %v2067 = vunpack.c.l.b16 %v1994
  %v2068 = vunpack.c.h.b16 %v1994
  %v2069 = vunpack.c.l.b16 %v1995
  %v2070 = vunpack.c.h.b16 %v1995
  %v2071 = vunpack.c.l.b16 %v1996
  %v2072 = vunpack.c.h.b16 %v1996
  %v2073 = vunpack.c.l.b16 %v1997
  %v2074 = vunpack.c.h.b16 %v1997
  %v2075 = vunpack.c.l.b16 %v1998
  %v2076 = vunpack.c.h.b16 %v1998
  %v2077 = vunpack.c.l.b16 %v1999
  %v2078 = vunpack.c.h.b16 %v1999
  %v2079 = vunpack.c.l.b16 %v2000
  %v2080 = vunpack.c.h.b16 %v2000
  %v2081 = vunpack.c.l.b16 %v2001
  %v2082 = vunpack.c.h.b16 %v2001
  %v2083 = vunpack.c.l.b16 %v2002
  %v2084 = vunpack.c.h.b16 %v2002
  %v2085 = vunpack.c.l.b16 %v2003
  %v2086 = vunpack.c.h.b16 %v2003
  %v2087 = vunpack.c.l.b16 %v2004
  %v2088 = vunpack.c.h.b16 %v2004
  %v2089 = vunpack.c.l.b16 %v2005
  %v2090 = vunpack.c.h.b16 %v2005
  %v2091 = vunpack.c.l.b16 %v2006
  %v2092 = vunpack.c.h.b16 %v2006
  %v2093 = vunpack.c.l.b16 %v2007
  %v2094 = vunpack.c.h.b16 %v2007
  %v2095 = vunpack.c.l.b16 %v2008
  %v2096 = vunpack.c.h.b16 %v2008
  %v2097 = vunpack.c.l.b16 %v2009
  %v2098 = vunpack.c.h.b16 %v2009
  %v2099 = vunpack.c.l.b16 %v2010
  %v2100 = vunpack.c.h.b16 %v2010
  %v2101 = vunpack.c.l.b16 %v2011
  %v2102 = vunpack.c.h.b16 %v2011
  %v2103 = vunpack.c.l.b16 %v2012
  %v2104 = vunpack.c.h.b16 %v2012
  %v2105 = vunpack.c.l.b16 %v2013
  %v2106 = vunpack.c.h.b16 %v2013
  %v2107 = vunpack.c.l.b16 %v2014
  %v2108 = vunpack.c.h.b16 %v2014
  %v2109 = vunpack.c.l.b16 %v2015
  %v2110 = vunpack.c.h.b16 %v2015
  %v2111 = vunpack.c.l.b16 %v2016
  %v2112 = vunpack.c.h.b16 %v2016
  %v2113 = vunpack.c.l.b16 %v2017
  %v2114 = vunpack.c.h.b16 %v2017
  %v2115 = vpack.c.b16 %v2055, %v2051
  %v2116 = vpack.c.b16 %v2056, %v2052
  %v2117 = vpack.c.b16 %v2057, %v2053
  %v2118 = vpack.c.b16 %v2058, %v2054
  %v2119 = vpack.c.b16 %v2063, %v2059
  %v2120 = vpack.c.b16 %v2064, %v2060
  %v2121 = vpack.c.b16 %v2065, %v2061
  %v2122 = vpack.c.b16 %v2066, %v2062
  %v2123 = vpack.c.b16 %v2071, %v2067
  %v2124 = vpack.c.b16 %v2072, %v2068
  %v2125 = vpack.c.b16 %v2073, %v2069
  %v2126 = vpack.c.b16 %v2074, %v2070
  %v2127 = vpack.c.b16 %v2079, %v2075
  %v2128 = vpack.c.b16 %v2080, %v2076
  %v2129 = vpack.c.b16 %v2081, %v2077
  %v2130 = vpack.c.b16 %v2082, %v2078
  %v2131 = vpack.c.b16 %v2087, %v2083
  %v2132 = vpack.c.b16 %v2088, %v2084
  %v2133 = vpack.c.b16 %v2089, %v2085
  %v2134 = vpack.c.b16 %v2090, %v2086
  %v2135 = vpack.c.b16 %v2095, %v2091
  %v2136 = vpack.c.b16 %v2096, %v2092
  %v2137 = vpack.c.b16 %v2097, %v2093
  %v2138 = vpack.c.b16 %v2098, %v2094
  %v2139 = vpack.c.b16 %v2103, %v2099
  %v2140 = vpack.c.b16 %v2104, %v2100
  %v2141 = vpack.c.b16 %v2105, %v2101
  %v2142 = vpack.c.b16 %v2106, %v2102
  %v2143 = vpack.c.b16 %v2111, %v2107
  %v2144 = vpack.c.b16 %v2112, %v2108
  %v2145 = vpack.c.b16 %v2113, %v2109
  %v2146 = vpack.c.b16 %v2114, %v2110
  %2179 = vmatprep.subr.bf16.mxu0 %v2116
  %2180 = vmatpush1.bf16.msra.mxu0 %v2115
  %2181 = vmatprep.subr.bf16.mxu0 %v2120
  %2182 = vmatpush1.bf16.msra.mxu0 %v2119
  %2183 = vmatprep.subr.bf16.mxu0 %v2124
  %2184 = vmatpush1.bf16.msra.mxu0 %v2123
  %2185 = vmatprep.subr.bf16.mxu0 %v2128
  %2186 = vmatpush1.bf16.msra.mxu0 %v2127
  %2187 = vmatprep.subr.bf16.mxu0 %v2132
  %2188 = vmatpush1.bf16.msra.mxu0 %v2131
  %2189 = vmatprep.subr.bf16.mxu0 %v2136
  %2190 = vmatpush1.bf16.msra.mxu0 %v2135
  %2191 = vmatprep.subr.bf16.mxu0 %v2140
  %2192 = vmatpush1.bf16.msra.mxu0 %v2139
  %2193 = vmatprep.subr.bf16.mxu0 %v2144
  %2194 = vmatpush1.bf16.msra.mxu0 %v2143
  %2195 = vmatprep.subr.bf16.mxu0 0
  %2196 = vmatpush1.bf16.msra.mxu0 0
  %2197 = vmatprep.subr.bf16.mxu0 0
  %2198 = vmatpush1.bf16.msra.mxu0 0
  %2199 = vmatprep.subr.bf16.mxu0 0
  %2200 = vmatpush1.bf16.msra.mxu0 0
  %2201 = vmatprep.subr.bf16.mxu0 0
  %2202 = vmatpush1.bf16.msra.mxu0 0
  %2203 = vmatprep.subr.bf16.mxu0 0
  %2204 = vmatpush1.bf16.msra.mxu0 0
  %2205 = vmatprep.subr.bf16.mxu0 0
  %2206 = vmatpush1.bf16.msra.mxu0 0
  %2207 = vmatprep.subr.bf16.mxu0 0
  %2208 = vmatpush1.bf16.msra.mxu0 0
  %2209 = vmatprep.subr.bf16.mxu0 0
  %2210 = vmatpush1.bf16.msra.mxu0 0
  %2211 = vmatprep.mubr.bf16.mxu0 0
  %2212 = vmatmul.mubr.bf16.gmra.mrb[0].mxu0 %v2018
  %v2213 = vpop.f32.mrb[0].mxu0
  %v2214 = vadd.f32 0.0, %v2213
  %v2215 = vpop.f32.mrb[0].mxu0
  %v2216 = vadd.f32 0.0, %v2215
  %v2217 = vpop.f32.mrb[0].mxu0
  %v2218 = vpop.f32.mrb[0].mxu0
  %2219 = vdwg.mxu0
  %2220 = vmatprep.subr.bf16.mxu0 %v2118
  %2221 = vmatpush1.bf16.msra.mxu0 %v2117
  %2222 = vmatprep.subr.bf16.mxu0 %v2122
  %2223 = vmatpush1.bf16.msra.mxu0 %v2121
  %2224 = vmatprep.subr.bf16.mxu0 %v2126
  %2225 = vmatpush1.bf16.msra.mxu0 %v2125
  %2226 = vmatprep.subr.bf16.mxu0 %v2130
  %2227 = vmatpush1.bf16.msra.mxu0 %v2129
  %2228 = vmatprep.subr.bf16.mxu0 %v2134
  %2229 = vmatpush1.bf16.msra.mxu0 %v2133
  %2230 = vmatprep.subr.bf16.mxu0 %v2138
  %2231 = vmatpush1.bf16.msra.mxu0 %v2137
  %2232 = vmatprep.subr.bf16.mxu0 %v2142
  %2233 = vmatpush1.bf16.msra.mxu0 %v2141
  %2234 = vmatprep.subr.bf16.mxu0 %v2146
  %2235 = vmatpush1.bf16.msra.mxu0 %v2145
  %2236 = vmatprep.subr.bf16.mxu0 0
  %2237 = vmatpush1.bf16.msra.mxu0 0
  %2238 = vmatprep.subr.bf16.mxu0 0
  %2239 = vmatpush1.bf16.msra.mxu0 0
  %2240 = vmatprep.subr.bf16.mxu0 0
  %2241 = vmatpush1.bf16.msra.mxu0 0
  %2242 = vmatprep.subr.bf16.mxu0 0
  %2243 = vmatpush1.bf16.msra.mxu0 0
  %2244 = vmatprep.subr.bf16.mxu0 0
  %2245 = vmatpush1.bf16.msra.mxu0 0
  %2246 = vmatprep.subr.bf16.mxu0 0
  %2247 = vmatpush1.bf16.msra.mxu0 0
  %2248 = vmatprep.subr.bf16.mxu0 0
  %2249 = vmatpush1.bf16.msra.mxu0 0
  %2250 = vmatprep.subr.bf16.mxu0 0
  %2251 = vmatpush1.bf16.msra.mxu0 0
  %2252 = vmatprep.mubr.bf16.mxu0 0
  %2253 = vmatmul.mubr.bf16.gmra.mrb[0].mxu0 %v2018
  %v2254 = vpop.f32.mrb[0].mxu0
  %v2255 = vadd.f32 0.0, %v2254
  %v2256 = vpop.f32.mrb[0].mxu0
  %v2257 = vadd.f32 0.0, %v2256
  %v2258 = vpop.f32.mrb[0].mxu0
  %v2259 = vpop.f32.mrb[0].mxu0
  %2260 = vdwg.mxu0
  %s2261 = scalar_lea.vmem %s0, 24
  %v2262 = vld [vmem:[%s2261] sm:$0xf]
  %v2263 = vunpack.c.l.bf16 %v2262
  %v2268 = vcombine.low %v2214, %v2216
  %v2269 = vcombine.low %v2255, %v2257
  %v2271 = vunpack.c.l.s4 1983009808
  %v2272 = vunpack.c.0.s8 %v2271
  %v2273 = vlaneseq
  %v2274 = vshrl.u32 %v2273, 7
  %v2275 = vsub.s32 %v2272, %v2274
  %v2276 = vrot.slane %v2268, %v2275
  %v2278 = vunpack.c.l.s4 1983009808
  %v2279 = vunpack.c.0.s8 %v2278
  %v2280 = vlaneseq
  %v2281 = vshrl.u32 %v2280, 7
  %v2282 = vsub.s32 %v2279, %v2281
  %v2283 = vrot.slane %v2269, %v2282
  %v2284 = vcombine.low %v2276, %v2283
  %v2286 = vadd.f32 %v2263, %v2284
  %v2287 = vmul.f32 %v2286, 0.5
  %v2288 = vtanh.pop %v2287
  %v2289 = vmul.f32 %v2288, 0.5
  %v2290 = vadd.f32 %v2289, 0.5
  %v2292 = vrot.slane %v2286, 2
  %v2294 = vmul.f32 %v2292, 0.5
  %v2295 = vtanh.pop %v2294
  %v2296 = vmul.f32 %v2295, 0.5
  %v2297 = vadd.f32 %v2296, 0.5
  %v2298 = vrot.slane %v2286, 4
  %v2300 = vtanh.pop %v2298
  %v2301 = vrot.slane %v2286, 6
  %v2303 = vmul.f32 %v2301, 0.5
  %v2304 = vtanh.pop %v2303
  %v2305 = vmul.f32 %v2304, 0.5
  %v2306 = vadd.f32 %v2305, 0.5
  %v2307 = vmul.f32 %v2297, %v1981
  %v2308 = vmul.f32 %v2290, %v2300
  %v2309 = vadd.f32 %v2307, %v2308
  %v2310 = vtanh.pop %v2309
  %v2311 = vmul.f32 %v2306, %v2310
  %s2312 = scalar_lea.vmem %s2, 12
  %2313 = vst [vmem:[%s2312] sm:$0x3] %v2311
  %v2314 = vld [vmem:[%s1] sm:$0xff]
  %v2315 = vld [vmem:[%s1 + $0x8] sm:$0xff]
  %v2316 = vld [vmem:[%s1 + $0x10] sm:$0xff]
  %v2317 = vld [vmem:[%s1 + $0x18] sm:$0xff]
  %v2318 = vld [vmem:[%s1 + $0x20] sm:$0xff]
  %v2319 = vld [vmem:[%s1 + $0x28] sm:$0xff]
  %v2320 = vld [vmem:[%s1 + $0x30] sm:$0xff]
  %v2321 = vld [vmem:[%s1 + $0x38] sm:$0xff]
  %v2322 = vld [vmem:[%s1 + $0x40] sm:$0xff]
  %v2323 = vld [vmem:[%s1 + $0x48] sm:$0xff]
  %v2324 = vld [vmem:[%s1 + $0x50] sm:$0xff]
  %v2325 = vld [vmem:[%s1 + $0x58] sm:$0xff]
  %v2326 = vld [vmem:[%s1 + $0x60] sm:$0xff]
  %v2327 = vld [vmem:[%s1 + $0x68] sm:$0xff]
  %v2328 = vld [vmem:[%s1 + $0x70] sm:$0xff]
  %v2329 = vld [vmem:[%s1 + $0x78] sm:$0xff]
  %v2330 = vld [vmem:[%s1 + $0x80] sm:$0xff]
  %v2331 = vld [vmem:[%s1 + $0x88] sm:$0xff]
  %v2332 = vld [vmem:[%s1 + $0x90] sm:$0xff]
  %v2333 = vld [vmem:[%s1 + $0x98] sm:$0xff]
  %v2334 = vld [vmem:[%s1 + $0xa0] sm:$0xff]
  %v2335 = vld [vmem:[%s1 + $0xa8] sm:$0xff]
  %v2336 = vld [vmem:[%s1 + $0xb0] sm:$0xff]
  %v2337 = vld [vmem:[%s1 + $0xb8] sm:$0xff]
  %v2338 = vld [vmem:[%s1 + $0xc0] sm:$0xff]
  %v2339 = vld [vmem:[%s1 + $0xc8] sm:$0xff]
  %v2340 = vld [vmem:[%s1 + $0xd0] sm:$0xff]
  %v2341 = vld [vmem:[%s1 + $0xd8] sm:$0xff]
  %v2342 = vld [vmem:[%s1 + $0xe0] sm:$0xff]
  %v2343 = vld [vmem:[%s1 + $0xe8] sm:$0xff]
  %v2344 = vld [vmem:[%s1 + $0xf0] sm:$0xff]
  %v2345 = vld [vmem:[%s1 + $0xf8] sm:$0xff]
  %v2346 = vpack.c.bf16 %v2311, %v2311
  %v2379 = vunpack.c.l.b16 %v2314
  %v2380 = vunpack.c.h.b16 %v2314
  %v2381 = vunpack.c.l.b16 %v2315
  %v2382 = vunpack.c.h.b16 %v2315
  %v2383 = vunpack.c.l.b16 %v2316
  %v2384 = vunpack.c.h.b16 %v2316
  %v2385 = vunpack.c.l.b16 %v2317
  %v2386 = vunpack.c.h.b16 %v2317
  %v2387 = vunpack.c.l.b16 %v2318
  %v2388 = vunpack.c.h.b16 %v2318
  %v2389 = vunpack.c.l.b16 %v2319
  %v2390 = vunpack.c.h.b16 %v2319
  %v2391 = vunpack.c.l.b16 %v2320
  %v2392 = vunpack.c.h.b16 %v2320
  %v2393 = vunpack.c.l.b16 %v2321
  %v2394 = vunpack.c.h.b16 %v2321
  %v2395 = vunpack.c.l.b16 %v2322
  %v2396 = vunpack.c.h.b16 %v2322
  %v2397 = vunpack.c.l.b16 %v2323
  %v2398 = vunpack.c.h.b16 %v2323
  %v2399 = vunpack.c.l.b16 %v2324
  %v2400 = vunpack.c.h.b16 %v2324
  %v2401 = vunpack.c.l.b16 %v2325
  %v2402 = vunpack.c.h.b16 %v2325
  %v2403 = vunpack.c.l.b16 %v2326
  %v2404 = vunpack.c.h.b16 %v2326
  %v2405 = vunpack.c.l.b16 %v2327
  %v2406 = vunpack.c.h.b16 %v2327
  %v2407 = vunpack.c.l.b16 %v2328
  %v2408 = vunpack.c.h.b16 %v2328
  %v2409 = vunpack.c.l.b16 %v2329
  %v2410 = vunpack.c.h.b16 %v2329
  %v2411 = vunpack.c.l.b16 %v2330
  %v2412 = vunpack.c.h.b16 %v2330
  %v2413 = vunpack.c.l.b16 %v2331
  %v2414 = vunpack.c.h.b16 %v2331
  %v2415 = vunpack.c.l.b16 %v2332
  %v2416 = vunpack.c.h.b16 %v2332
  %v2417 = vunpack.c.l.b16 %v2333
  %v2418 = vunpack.c.h.b16 %v2333
  %v2419 = vunpack.c.l.b16 %v2334
  %v2420 = vunpack.c.h.b16 %v2334
  %v2421 = vunpack.c.l.b16 %v2335
  %v2422 = vunpack.c.h.b16 %v2335
  %v2423 = vunpack.c.l.b16 %v2336
  %v2424 = vunpack.c.h.b16 %v2336
  %v2425 = vunpack.c.l.b16 %v2337
  %v2426 = vunpack.c.h.b16 %v2337
  %v2427 = vunpack.c.l.b16 %v2338
  %v2428 = vunpack.c.h.b16 %v2338
  %v2429 = vunpack.c.l.b16 %v2339
  %v2430 = vunpack.c.h.b16 %v2339
  %v2431 = vunpack.c.l.b16 %v2340
  %v2432 = vunpack.c.h.b16 %v2340
  %v2433 = vunpack.c.l.b16 %v2341
  %v2434 = vunpack.c.h.b16 %v2341
  %v2435 = vunpack.c.l.b16 %v2342
  %v2436 = vunpack.c.h.b16 %v2342
  %v2437 = vunpack.c.l.b16 %v2343
  %v2438 = vunpack.c.h.b16 %v2343
  %v2439 = vunpack.c.l.b16 %v2344
  %v2440 = vunpack.c.h.b16 %v2344
  %v2441 = vunpack.c.l.b16 %v2345
  %v2442 = vunpack.c.h.b16 %v2345
  %v2443 = vpack.c.b16 %v2383, %v2379
  %v2444 = vpack.c.b16 %v2384, %v2380
  %v2445 = vpack.c.b16 %v2385, %v2381
  %v2446 = vpack.c.b16 %v2386, %v2382
  %v2447 = vpack.c.b16 %v2391, %v2387
  %v2448 = vpack.c.b16 %v2392, %v2388
  %v2449 = vpack.c.b16 %v2393, %v2389
  %v2450 = vpack.c.b16 %v2394, %v2390
  %v2451 = vpack.c.b16 %v2399, %v2395
  %v2452 = vpack.c.b16 %v2400, %v2396
  %v2453 = vpack.c.b16 %v2401, %v2397
  %v2454 = vpack.c.b16 %v2402, %v2398
  %v2455 = vpack.c.b16 %v2407, %v2403
  %v2456 = vpack.c.b16 %v2408, %v2404
  %v2457 = vpack.c.b16 %v2409, %v2405
  %v2458 = vpack.c.b16 %v2410, %v2406
  %v2459 = vpack.c.b16 %v2415, %v2411
  %v2460 = vpack.c.b16 %v2416, %v2412
  %v2461 = vpack.c.b16 %v2417, %v2413
  %v2462 = vpack.c.b16 %v2418, %v2414
  %v2463 = vpack.c.b16 %v2423, %v2419
  %v2464 = vpack.c.b16 %v2424, %v2420
  %v2465 = vpack.c.b16 %v2425, %v2421
  %v2466 = vpack.c.b16 %v2426, %v2422
  %v2467 = vpack.c.b16 %v2431, %v2427
  %v2468 = vpack.c.b16 %v2432, %v2428
  %v2469 = vpack.c.b16 %v2433, %v2429
  %v2470 = vpack.c.b16 %v2434, %v2430
  %v2471 = vpack.c.b16 %v2439, %v2435
  %v2472 = vpack.c.b16 %v2440, %v2436
  %v2473 = vpack.c.b16 %v2441, %v2437
  %v2474 = vpack.c.b16 %v2442, %v2438
  %2507 = vmatprep.subr.bf16.mxu0 %v2444
  %2508 = vmatpush1.bf16.msra.mxu0 %v2443
  %2509 = vmatprep.subr.bf16.mxu0 %v2448
  %2510 = vmatpush1.bf16.msra.mxu0 %v2447
  %2511 = vmatprep.subr.bf16.mxu0 %v2452
  %2512 = vmatpush1.bf16.msra.mxu0 %v2451
  %2513 = vmatprep.subr.bf16.mxu0 %v2456
  %2514 = vmatpush1.bf16.msra.mxu0 %v2455
  %2515 = vmatprep.subr.bf16.mxu0 %v2460
  %2516 = vmatpush1.bf16.msra.mxu0 %v2459
  %2517 = vmatprep.subr.bf16.mxu0 %v2464
  %2518 = vmatpush1.bf16.msra.mxu0 %v2463
  %2519 = vmatprep.subr.bf16.mxu0 %v2468
  %2520 = vmatpush1.bf16.msra.mxu0 %v2467
  %2521 = vmatprep.subr.bf16.mxu0 %v2472
  %2522 = vmatpush1.bf16.msra.mxu0 %v2471
  %2523 = vmatprep.subr.bf16.mxu0 0
  %2524 = vmatpush1.bf16.msra.mxu0 0
  %2525 = vmatprep.subr.bf16.mxu0 0
  %2526 = vmatpush1.bf16.msra.mxu0 0
  %2527 = vmatprep.subr.bf16.mxu0 0
  %2528 = vmatpush1.bf16.msra.mxu0 0
  %2529 = vmatprep.subr.bf16.mxu0 0
  %2530 = vmatpush1.bf16.msra.mxu0 0
  %2531 = vmatprep.subr.bf16.mxu0 0
  %2532 = vmatpush1.bf16.msra.mxu0 0
  %2533 = vmatprep.subr.bf16.mxu0 0
  %2534 = vmatpush1.bf16.msra.mxu0 0
  %2535 = vmatprep.subr.bf16.mxu0 0
  %2536 = vmatpush1.bf16.msra.mxu0 0
  %2537 = vmatprep.subr.bf16.mxu0 0
  %2538 = vmatpush1.bf16.msra.mxu0 0
  %2539 = vmatprep.mubr.bf16.mxu0 0
  %2540 = vmatmul.mubr.bf16.gmra.mrb[0].mxu0 %v2346
  %v2541 = vpop.f32.mrb[0].mxu0
  %v2542 = vadd.f32 0.0, %v2541
  %v2543 = vpop.f32.mrb[0].mxu0
  %v2544 = vadd.f32 0.0, %v2543
  %v2545 = vpop.f32.mrb[0].mxu0
  %v2546 = vpop.f32.mrb[0].mxu0
  %2547 = vdwg.mxu0
  %2548 = vmatprep.subr.bf16.mxu0 %v2446
  %2549 = vmatpush1.bf16.msra.mxu0 %v2445
  %2550 = vmatprep.subr.bf16.mxu0 %v2450
  %2551 = vmatpush1.bf16.msra.mxu0 %v2449
  %2552 = vmatprep.subr.bf16.mxu0 %v2454
  %2553 = vmatpush1.bf16.msra.mxu0 %v2453
  %2554 = vmatprep.subr.bf16.mxu0 %v2458
  %2555 = vmatpush1.bf16.msra.mxu0 %v2457
  %2556 = vmatprep.subr.bf16.mxu0 %v2462
  %2557 = vmatpush1.bf16.msra.mxu0 %v2461
  %2558 = vmatprep.subr.bf16.mxu0 %v2466
  %2559 = vmatpush1.bf16.msra.mxu0 %v2465
  %2560 = vmatprep.subr.bf16.mxu0 %v2470
  %2561 = vmatpush1.bf16.msra.mxu0 %v2469
  %2562 = vmatprep.subr.bf16.mxu0 %v2474
  %2563 = vmatpush1.bf16.msra.mxu0 %v2473
  %2564 = vmatprep.subr.bf16.mxu0 0
  %2565 = vmatpush1.bf16.msra.mxu0 0
  %2566 = vmatprep.subr.bf16.mxu0 0
  %2567 = vmatpush1.bf16.msra.mxu0 0
  %2568 = vmatprep.subr.bf16.mxu0 0
  %2569 = vmatpush1.bf16.msra.mxu0 0
  %2570 = vmatprep.subr.bf16.mxu0 0
  %2571 = vmatpush1.bf16.msra.mxu0 0
  %2572 = vmatprep.subr.bf16.mxu0 0
  %2573 = vmatpush1.bf16.msra.mxu0 0
  %2574 = vmatprep.subr.bf16.mxu0 0
  %2575 = vmatpush1.bf16.msra.mxu0 0
  %2576 = vmatprep.subr.bf16.mxu0 0
  %2577 = vmatpush1.bf16.msra.mxu0 0
  %2578 = vmatprep.subr.bf16.mxu0 0
  %2579 = vmatpush1.bf16.msra.mxu0 0
  %2580 = vmatprep.mubr.bf16.mxu0 0
  %2581 = vmatmul.mubr.bf16.gmra.mrb[0].mxu0 %v2346
  %v2582 = vpop.f32.mrb[0].mxu0
  %v2583 = vadd.f32 0.0, %v2582
  %v2584 = vpop.f32.mrb[0].mxu0
  %v2585 = vadd.f32 0.0, %v2584
  %v2586 = vpop.f32.mrb[0].mxu0
  %v2587 = vpop.f32.mrb[0].mxu0
  %2588 = vdwg.mxu0
  %s2589 = scalar_lea.vmem %s0, 28
  %v2590 = vld [vmem:[%s2589] sm:$0xf]
  %v2591 = vunpack.c.l.bf16 %v2590
  %v2596 = vcombine.low %v2542, %v2544
  %v2597 = vcombine.low %v2583, %v2585
  %v2599 = vunpack.c.l.s4 1983009808
  %v2600 = vunpack.c.0.s8 %v2599
  %v2601 = vlaneseq
  %v2602 = vshrl.u32 %v2601, 7
  %v2603 = vsub.s32 %v2600, %v2602
  %v2604 = vrot.slane %v2596, %v2603
  %v2606 = vunpack.c.l.s4 1983009808
  %v2607 = vunpack.c.0.s8 %v2606
  %v2608 = vlaneseq
  %v2609 = vshrl.u32 %v2608, 7
  %v2610 = vsub.s32 %v2607, %v2609
  %v2611 = vrot.slane %v2597, %v2610
  %v2612 = vcombine.low %v2604, %v2611
  %v2614 = vadd.f32 %v2591, %v2612
  %v2615 = vmul.f32 %v2614, 0.5
  %v2616 = vtanh.pop %v2615
  %v2617 = vmul.f32 %v2616, 0.5
  %v2618 = vadd.f32 %v2617, 0.5
  %v2620 = vrot.slane %v2614, 2
  %v2622 = vmul.f32 %v2620, 0.5
  %v2623 = vtanh.pop %v2622
  %v2624 = vmul.f32 %v2623, 0.5
  %v2625 = vadd.f32 %v2624, 0.5
  %v2626 = vrot.slane %v2614, 4
  %v2628 = vtanh.pop %v2626
  %v2629 = vrot.slane %v2614, 6
  %v2631 = vmul.f32 %v2629, 0.5
  %v2632 = vtanh.pop %v2631
  %v2633 = vmul.f32 %v2632, 0.5
  %v2634 = vadd.f32 %v2633, 0.5
  %v2635 = vmul.f32 %v2625, %v2309
  %v2636 = vmul.f32 %v2618, %v2628
  %v2637 = vadd.f32 %v2635, %v2636
  %v2638 = vtanh.pop %v2637
  %v2639 = vmul.f32 %v2634, %v2638
  %s2640 = scalar_lea.vmem %s2, 14
  %2641 = vst [vmem:[%s2640] sm:$0x3] %v2639
  %2642 = vst [vmem:[#allocation2] sm:$0x3] %v2639
  %2643 = vst [vmem:[#allocation3] sm:$0x3] %v2637
  // Predicated region
  $region14: #{lstm_module_forward.1} parent=0 // pred_check
    _
  $region15: #{lstm_module_forward.1} parent=0 // pred_check_branch
    %2645 = sbr.rel (0) target = $region17
  $region16: #{lstm_module_forward.1} parent=0 // pred_region
    _
  $region17: #{lstm_module_forward.1} parent=0 // pred_fallthru
    _
  // Predicated region
  $region18: #{lstm_module_forward.1} parent=0 // pred_check
    _
  $region19: #{lstm_module_forward.1} parent=0 // pred_check_branch
    %2647 = sbr.rel (0) target = $region21
  $region20: #{lstm_module_forward.1} parent=0 // pred_region
    _
  $region21: #{lstm_module_forward.1} parent=0 // pred_fallthru
    _

</llo_original>
